<compile_context>
chip_gen: v7x
topology: tpu7x:2x2x1
jax: 0.10.0
libtpu: 0.0.40
codegen_flags: <defaults>
</compile_context>

<pallas_src>
import functools
import math

import jax
import jax.numpy as jnp
from jax.experimental import pallas as pl
from jax.experimental.pallas import tpu as pltpu

VOCAB = 1024        # embedding "input_dim"
EMBED = 100         # true embedding dim
HIDDEN = 100        # true LSTM hidden dim
E_PAD = 128         # lane-padded embedding dim
H_PAD = 128         # lane-padded hidden dim
G_PAD = 4 * H_PAD   # padded gate width: [i | f | g | o], 128 lanes each


def lstm_kernel(tok_ref, emb_ref, w_ih_ref, w_hh_ref, b_ref, w_fc_ref, b_fc_ref,
                out_ref, gx_scr, *, batch, seq, batch_pad):
    rows = seq * batch_pad

    # ---- fused embedding gather as one one-hot MXU matmul -------------------
    # tok_ref: (rows, 1) int32, time-major (row = t*batch_pad + b).
    # Out-of-range tokens yield an all-zero one-hot row -> zero embedding.
    tok = tok_ref[...]                                           # (rows, 1)
    onehot = (jax.lax.broadcasted_iota(jnp.int32, (rows, VOCAB), 1) == tok
              ).astype(jnp.bfloat16)                             # (rows, VOCAB)
    x = jnp.dot(onehot, emb_ref[...],
                preferred_element_type=jnp.float32)              # (rows, E_PAD)

    # ---- input projection for all timesteps: one MXU matmul (bf16, f32 acc) --
    gx_scr[...] = jnp.dot(x.astype(jnp.bfloat16), w_ih_ref[...],
                          preferred_element_type=jnp.float32) + b_ref[...]

    # ---- sequential LSTM recurrence (only h @ W_hh stays in the loop) -------
    w_hh = w_hh_ref[...]                                         # hoisted load

    def step(t, carry):
        h, c = carry
        off = pl.multiple_of(t * batch_pad, 8)                   # aligned sublane offset
        g_x = gx_scr[pl.ds(off, batch_pad), :]                   # (Bp, 512)
        gates = g_x + jnp.dot(h.astype(jnp.bfloat16), w_hh,
                              preferred_element_type=jnp.float32)
        i_g = jax.nn.sigmoid(gates[:, 0 * H_PAD:1 * H_PAD])
        f_g = jax.nn.sigmoid(gates[:, 1 * H_PAD:2 * H_PAD])
        g_g = jnp.tanh(gates[:, 2 * H_PAD:3 * H_PAD])
        o_g = jax.nn.sigmoid(gates[:, 3 * H_PAD:4 * H_PAD])
        c = f_g * c + i_g * g_g
        h = o_g * jnp.tanh(c)
        return h, c

    h0 = jnp.zeros((batch_pad, H_PAD), jnp.float32)
    c0 = jnp.zeros((batch_pad, H_PAD), jnp.float32)
    h, _ = jax.lax.fori_loop(0, seq, step, (h0, c0), unroll=(seq <= 16))

    # ---- last hidden state -> linear -> sigmoid ------------------------------
    logits = jnp.sum(h * w_fc_ref[...], axis=-1, keepdims=True) + b_fc_ref[...]
    out_ref[...] = jax.nn.sigmoid(logits[:batch, :])


def init_params(key):
    """Parameters in the original PyTorch layout."""
    ks = jax.random.split(key, 7)
    k = 1.0 / math.sqrt(HIDDEN)
    u = lambda kk, shape: jax.random.uniform(kk, shape, jnp.float32, -k, k)
    return dict(
        embedding=jax.random.normal(ks[0], (VOCAB, EMBED), jnp.float32),
        w_ih=u(ks[1], (4 * HIDDEN, EMBED)),    # gate order: i, f, g, o
        w_hh=u(ks[2], (4 * HIDDEN, HIDDEN)),
        b_ih=u(ks[3], (4 * HIDDEN,)),
        b_hh=u(ks[4], (4 * HIDDEN,)),
        # TODO(synk): spec declares nn.Linear(50, 1); see module-level note.
        w_fc=u(ks[5], (1, HIDDEN)),
        b_fc=u(ks[6], (1,)),
    )


def prepare_kernel_params(params):
    """One-time host-side padding / (K,N) transposition / bf16 cast of weights."""
    emb = jnp.zeros((VOCAB, E_PAD), jnp.float32).at[:, :EMBED].set(params['embedding'])
    w_ih_t = jnp.zeros((E_PAD, G_PAD), jnp.float32)
    w_hh_t = jnp.zeros((H_PAD, G_PAD), jnp.float32)
    bias = jnp.zeros((1, G_PAD), jnp.float32)
    for g in range(4):
        src = slice(g * HIDDEN, (g + 1) * HIDDEN)
        dst = slice(g * H_PAD, g * H_PAD + HIDDEN)
        w_ih_t = w_ih_t.at[:EMBED, dst].set(params['w_ih'][src, :].T)
        w_hh_t = w_hh_t.at[:HIDDEN, dst].set(params['w_hh'][src, :].T)
        bias = bias.at[0, dst].set(params['b_ih'][src] + params['b_hh'][src])
    w_fc = jnp.zeros((1, H_PAD), jnp.float32).at[0, :HIDDEN].set(params['w_fc'][0])
    b_fc = params['b_fc'].reshape(1, 1).astype(jnp.float32)
    return dict(emb=emb.astype(jnp.bfloat16),
                w_ih_t=w_ih_t.astype(jnp.bfloat16),
                w_hh_t=w_hh_t.astype(jnp.bfloat16),
                bias=bias, w_fc=w_fc, b_fc=b_fc)


def lstm_forward(tokens, kparams):
    B, S = tokens.shape
    B_pad = max(8, ((B + 7) // 8) * 8)      # sublane-aligned batch
    rows = S * B_pad

    # Time-major token column (row = t*B_pad + b); pad rows use token 0.
    tok_pad = jnp.zeros((B_pad, S), jnp.int32).at[:B, :].set(tokens.astype(jnp.int32))
    tok_col = tok_pad.T.reshape(rows, 1)

    args = (tok_col, kparams['emb'], kparams['w_ih_t'], kparams['w_hh_t'],
            kparams['bias'], kparams['w_fc'], kparams['b_fc'])

    vmem = pl.BlockSpec(memory_space=pltpu.MemorySpace.VMEM)

    # Cost / VMEM accounting (one-hot matmul + input projection + recurrence).
    flops = (2 * rows * VOCAB * E_PAD
             + 2 * rows * E_PAD * G_PAD
             + 2 * S * B_pad * H_PAD * G_PAD)
    transcendentals = 5 * S * B_pad * H_PAD          # 3 sigmoid + 2 tanh per unit/step
    arg_bytes = sum(int(a.size) * a.dtype.itemsize for a in args)
    scratch_bytes = rows * G_PAD * 4                               # gx_scr (f32)
    onehot_bytes = rows * VOCAB * (4 + 2)                          # iota + bf16 one-hot temps
    needed = 2 * arg_bytes + scratch_bytes + onehot_bytes + (1 << 20)
    vmem_limit = int(min(100 * 2**20, max(32 * 2**20, 2 * needed)))

    return pl.pallas_call(
        functools.partial(lstm_kernel, batch=B, seq=S, batch_pad=B_pad),
        out_shape=jax.ShapeDtypeStruct((B, 1), jnp.float32),
        in_specs=[vmem] * len(args),
        out_specs=vmem,
        scratch_shapes=[pltpu.VMEM((rows, G_PAD), jnp.float32)],   # x @ W_ih + b, all steps
        compiler_params=pltpu.CompilerParams(vmem_limit_bytes=vmem_limit),
        cost_estimate=pl.CostEstimate(flops=flops,
                                      transcendentals=transcendentals,
                                      bytes_accessed=arg_bytes + B * 4),
    )(*args)


def reference_forward(tokens, params):
    """Pure-JAX f32 reference of the PyTorch forward."""
    x = jnp.take(params['embedding'], tokens, axis=0)            # (B, S, E)
    B, S, _ = x.shape
    h = jnp.zeros((B, HIDDEN), jnp.float32)
    c = jnp.zeros((B, HIDDEN), jnp.float32)
    for t in range(S):
        gates = (x[:, t, :] @ params['w_ih'].T + params['b_ih']
                 + h @ params['w_hh'].T + params['b_hh'])
        i_g = jax.nn.sigmoid(gates[:, 0 * HIDDEN:1 * HIDDEN])
        f_g = jax.nn.sigmoid(gates[:, 1 * HIDDEN:2 * HIDDEN])
        g_g = jnp.tanh(gates[:, 2 * HIDDEN:3 * HIDDEN])
        o_g = jax.nn.sigmoid(gates[:, 3 * HIDDEN:4 * HIDDEN])
        c = f_g * c + i_g * g_g
        h = o_g * jnp.tanh(c)
    logits = h @ params['w_fc'].T + params['b_fc']
    return jax.nn.sigmoid(logits)


if __name__ == "__main__":
    key = jax.random.PRNGKey(0)
    pkey, tkey = jax.random.split(key)
    params = init_params(pkey)
    kparams = prepare_kernel_params(params)

    B, S = 2, 8
    tokens = jax.random.randint(tkey, (B, S), 0, VOCAB, dtype=jnp.int32)

    out = jax.block_until_ready(lstm_forward(tokens, kparams))
    ref = jax.block_until_ready(reference_forward(tokens, params))

    assert out.shape == (B, 1), out.shape
    assert jnp.allclose(out, ref, atol=1e-2, rtol=1e-2), (out, ref)
    print("KERNEL_OK")
</pallas_src>

<mosaic_0001>
module attributes {stable_mosaic.version = 11 : i64} {
  func.func @lstm_kernel(%arg0: memref<64x1xi32, #tpu.memory_space<vmem>>, %arg1: memref<1024x128xbf16, #tpu.memory_space<vmem>>, %arg2: memref<128x512xbf16, #tpu.memory_space<vmem>>, %arg3: memref<128x512xbf16, #tpu.memory_space<vmem>>, %arg4: memref<1x512xf32, #tpu.memory_space<vmem>>, %arg5: memref<1x128xf32, #tpu.memory_space<vmem>>, %arg6: memref<1x1xf32, #tpu.memory_space<vmem>>, %arg7: memref<2x1xf32, #tpu.memory_space<vmem>>, %arg8: memref<64x512xf32, #tpu.memory_space<vmem>>) attributes {dimension_semantics = [], scalar_prefetch = 0 : i64, scratch_operands = 1 : i64, tpu.core_type = #tpu.core_type<tc>} {
    %c0 = arith.constant 0 : index
    %c0_0 = arith.constant 0 : index
    %0 = vector.load %arg0[%c0, %c0_0] : memref<64x1xi32, #tpu.memory_space<vmem>>, vector<64x1xi32>
    %1 = tpu.iota {dimensions = array<i32: 1>} : vector<64x1024xi32>
    %2 = vector.broadcast %0 : vector<64x1xi32> to vector<64x1024xi32>
    %3 = arith.cmpi eq, %1, %2 : vector<64x1024xi32>
    %4 = arith.extui %3 : vector<64x1024xi1> to vector<64x1024xi32>
    %5 = arith.sitofp %4 : vector<64x1024xi32> to vector<64x1024xf32>
    %6 = arith.truncf %5 : vector<64x1024xf32> to vector<64x1024xbf16>
    %c0_1 = arith.constant 0 : index
    %c0_2 = arith.constant 0 : index
    %7 = vector.load %arg1[%c0_1, %c0_2] : memref<1024x128xbf16, #tpu.memory_space<vmem>>, vector<1024x128xbf16>
    %cst = arith.constant dense<0.000000e+00> : vector<64x128xf32>
    %8 = tpu.matmul %6, %7, %cst {dimension_numbers = #tpu.dot_dimension_numbers<[1], [0], [0], [1], [0, 0, 1, 1], [], []>} : vector<64x1024xbf16>, vector<1024x128xbf16>, vector<64x128xf32> -> vector<64x128xf32>
    %9 = arith.truncf %8 : vector<64x128xf32> to vector<64x128xbf16>
    %c0_3 = arith.constant 0 : index
    %c0_4 = arith.constant 0 : index
    %10 = vector.load %arg2[%c0_3, %c0_4] : memref<128x512xbf16, #tpu.memory_space<vmem>>, vector<128x512xbf16>
    %cst_5 = arith.constant dense<0.000000e+00> : vector<64x512xf32>
    %11 = tpu.matmul %9, %10, %cst_5 {dimension_numbers = #tpu.dot_dimension_numbers<[1], [0], [0], [1], [0, 0, 1, 1], [], []>} : vector<64x128xbf16>, vector<128x512xbf16>, vector<64x512xf32> -> vector<64x512xf32>
    %c0_6 = arith.constant 0 : index
    %c0_7 = arith.constant 0 : index
    %12 = vector.load %arg4[%c0_6, %c0_7] : memref<1x512xf32, #tpu.memory_space<vmem>>, vector<1x512xf32>
    %13 = vector.broadcast %12 : vector<1x512xf32> to vector<64x512xf32>
    %14 = arith.addf %11, %13 : vector<64x512xf32>
    %c0_8 = arith.constant 0 : index
    %c0_9 = arith.constant 0 : index
    %15 = vector.load %arg8[%c0_8, %c0_9] : memref<64x512xf32, #tpu.memory_space<vmem>>, vector<64x512xf32>
    tpu.vector_store %arg8[%c0_8, %c0_9], %14 {strides = array<i32>} : memref<64x512xf32, #tpu.memory_space<vmem>>, vector<64x512xf32>,
    %c0_10 = arith.constant 0 : index
    %c0_11 = arith.constant 0 : index
    %16 = vector.load %arg3[%c0_10, %c0_11] : memref<128x512xbf16, #tpu.memory_space<vmem>>, vector<128x512xbf16>
    %cst_12 = arith.constant 0.000000e+00 : f32
    %17 = vector.broadcast %cst_12 : f32 to vector<8x128xf32>
    %cst_13 = arith.constant 0.000000e+00 : f32
    %18 = vector.broadcast %cst_13 : f32 to vector<8x128xf32>
    %c0_i32 = arith.constant 0 : i32
    %c8_i32 = arith.constant 8 : i32
    %19 = arith.muli %c0_i32, %c8_i32 : i32
    %20 = tpu.assume_multiple %19, 8 : i32
    %21 = arith.index_cast %20 : i32 to index
    %c0_14 = arith.constant 0 : index
    %22 = vector.load %arg8[%21, %c0_14] : memref<64x512xf32, #tpu.memory_space<vmem>>, vector<8x512xf32>
    %23 = arith.truncf %17 : vector<8x128xf32> to vector<8x128xbf16>
    %cst_15 = arith.constant dense<0.000000e+00> : vector<8x512xf32>
    %24 = tpu.matmul %23, %16, %cst_15 {dimension_numbers = #tpu.dot_dimension_numbers<[1], [0], [0], [1], [0, 0, 1, 1], [], []>} : vector<8x128xbf16>, vector<128x512xbf16>, vector<8x512xf32> -> vector<8x512xf32>
    %25 = arith.addf %22, %24 : vector<8x512xf32>
    %26 = vector.extract_strided_slice %25 {offsets = [0, 0], sizes = [8, 128], strides = [1, 1]} : vector<8x512xf32> to vector<8x128xf32>
    %27 = arith.negf %26 : vector<8x128xf32>
    %28 = math.exp %27 : vector<8x128xf32>
    %cst_16 = arith.constant 1.000000e+00 : f32
    %29 = vector.broadcast %cst_16 : f32 to vector<8x128xf32>
    %30 = arith.addf %29, %28 : vector<8x128xf32>
    %31 = arith.divf %29, %30 : vector<8x128xf32>
    %32 = vector.extract_strided_slice %25 {offsets = [0, 128], sizes = [8, 128], strides = [1, 1]} : vector<8x512xf32> to vector<8x128xf32>
    %33 = arith.negf %32 : vector<8x128xf32>
    %34 = math.exp %33 : vector<8x128xf32>
    %cst_17 = arith.constant 1.000000e+00 : f32
    %35 = vector.broadcast %cst_17 : f32 to vector<8x128xf32>
    %36 = arith.addf %35, %34 : vector<8x128xf32>
    %37 = arith.divf %35, %36 : vector<8x128xf32>
    %38 = vector.extract_strided_slice %25 {offsets = [0, 256], sizes = [8, 128], strides = [1, 1]} : vector<8x512xf32> to vector<8x128xf32>
    %39 = math.tanh %38 : vector<8x128xf32>
    %40 = vector.extract_strided_slice %25 {offsets = [0, 384], sizes = [8, 128], strides = [1, 1]} : vector<8x512xf32> to vector<8x128xf32>
    %41 = arith.negf %40 : vector<8x128xf32>
    %42 = math.exp %41 : vector<8x128xf32>
    %cst_18 = arith.constant 1.000000e+00 : f32
    %43 = vector.broadcast %cst_18 : f32 to vector<8x128xf32>
    %44 = arith.addf %43, %42 : vector<8x128xf32>
    %45 = arith.divf %43, %44 : vector<8x128xf32>
    %46 = arith.mulf %37, %18 : vector<8x128xf32>
    %47 = arith.mulf %31, %39 : vector<8x128xf32>
    %48 = arith.addf %46, %47 : vector<8x128xf32>
    %49 = math.tanh %48 : vector<8x128xf32>
    %50 = arith.mulf %45, %49 : vector<8x128xf32>
    %c1_i32 = arith.constant 1 : i32
    %c8_i32_19 = arith.constant 8 : i32
    %51 = arith.muli %c1_i32, %c8_i32_19 : i32
    %52 = tpu.assume_multiple %51, 8 : i32
    %53 = arith.index_cast %52 : i32 to index
    %c0_20 = arith.constant 0 : index
    %54 = vector.load %arg8[%53, %c0_20] : memref<64x512xf32, #tpu.memory_space<vmem>>, vector<8x512xf32>
    %55 = arith.truncf %50 : vector<8x128xf32> to vector<8x128xbf16>
    %cst_21 = arith.constant dense<0.000000e+00> : vector<8x512xf32>
    %56 = tpu.matmul %55, %16, %cst_21 {dimension_numbers = #tpu.dot_dimension_numbers<[1], [0], [0], [1], [0, 0, 1, 1], [], []>} : vector<8x128xbf16>, vector<128x512xbf16>, vector<8x512xf32> -> vector<8x512xf32>
    %57 = arith.addf %54, %56 : vector<8x512xf32>
    %58 = vector.extract_strided_slice %57 {offsets = [0, 0], sizes = [8, 128], strides = [1, 1]} : vector<8x512xf32> to vector<8x128xf32>
    %59 = arith.negf %58 : vector<8x128xf32>
    %60 = math.exp %59 : vector<8x128xf32>
    %cst_22 = arith.constant 1.000000e+00 : f32
    %61 = vector.broadcast %cst_22 : f32 to vector<8x128xf32>
    %62 = arith.addf %61, %60 : vector<8x128xf32>
    %63 = arith.divf %61, %62 : vector<8x128xf32>
    %64 = vector.extract_strided_slice %57 {offsets = [0, 128], sizes = [8, 128], strides = [1, 1]} : vector<8x512xf32> to vector<8x128xf32>
    %65 = arith.negf %64 : vector<8x128xf32>
    %66 = math.exp %65 : vector<8x128xf32>
    %cst_23 = arith.constant 1.000000e+00 : f32
    %67 = vector.broadcast %cst_23 : f32 to vector<8x128xf32>
    %68 = arith.addf %67, %66 : vector<8x128xf32>
    %69 = arith.divf %67, %68 : vector<8x128xf32>
    %70 = vector.extract_strided_slice %57 {offsets = [0, 256], sizes = [8, 128], strides = [1, 1]} : vector<8x512xf32> to vector<8x128xf32>
    %71 = math.tanh %70 : vector<8x128xf32>
    %72 = vector.extract_strided_slice %57 {offsets = [0, 384], sizes = [8, 128], strides = [1, 1]} : vector<8x512xf32> to vector<8x128xf32>
    %73 = arith.negf %72 : vector<8x128xf32>
    %74 = math.exp %73 : vector<8x128xf32>
    %cst_24 = arith.constant 1.000000e+00 : f32
    %75 = vector.broadcast %cst_24 : f32 to vector<8x128xf32>
    %76 = arith.addf %75, %74 : vector<8x128xf32>
    %77 = arith.divf %75, %76 : vector<8x128xf32>
    %78 = arith.mulf %69, %48 : vector<8x128xf32>
    %79 = arith.mulf %63, %71 : vector<8x128xf32>
    %80 = arith.addf %78, %79 : vector<8x128xf32>
    %81 = math.tanh %80 : vector<8x128xf32>
    %82 = arith.mulf %77, %81 : vector<8x128xf32>
    %c2_i32 = arith.constant 2 : i32
    %c8_i32_25 = arith.constant 8 : i32
    %83 = arith.muli %c2_i32, %c8_i32_25 : i32
    %84 = tpu.assume_multiple %83, 8 : i32
    %85 = arith.index_cast %84 : i32 to index
    %c0_26 = arith.constant 0 : index
    %86 = vector.load %arg8[%85, %c0_26] : memref<64x512xf32, #tpu.memory_space<vmem>>, vector<8x512xf32>
    %87 = arith.truncf %82 : vector<8x128xf32> to vector<8x128xbf16>
    %cst_27 = arith.constant dense<0.000000e+00> : vector<8x512xf32>
    %88 = tpu.matmul %87, %16, %cst_27 {dimension_numbers = #tpu.dot_dimension_numbers<[1], [0], [0], [1], [0, 0, 1, 1], [], []>} : vector<8x128xbf16>, vector<128x512xbf16>, vector<8x512xf32> -> vector<8x512xf32>
    %89 = arith.addf %86, %88 : vector<8x512xf32>
    %90 = vector.extract_strided_slice %89 {offsets = [0, 0], sizes = [8, 128], strides = [1, 1]} : vector<8x512xf32> to vector<8x128xf32>
    %91 = arith.negf %90 : vector<8x128xf32>
    %92 = math.exp %91 : vector<8x128xf32>
    %cst_28 = arith.constant 1.000000e+00 : f32
    %93 = vector.broadcast %cst_28 : f32 to vector<8x128xf32>
    %94 = arith.addf %93, %92 : vector<8x128xf32>
    %95 = arith.divf %93, %94 : vector<8x128xf32>
    %96 = vector.extract_strided_slice %89 {offsets = [0, 128], sizes = [8, 128], strides = [1, 1]} : vector<8x512xf32> to vector<8x128xf32>
    %97 = arith.negf %96 : vector<8x128xf32>
    %98 = math.exp %97 : vector<8x128xf32>
    %cst_29 = arith.constant 1.000000e+00 : f32
    %99 = vector.broadcast %cst_29 : f32 to vector<8x128xf32>
    %100 = arith.addf %99, %98 : vector<8x128xf32>
    %101 = arith.divf %99, %100 : vector<8x128xf32>
    %102 = vector.extract_strided_slice %89 {offsets = [0, 256], sizes = [8, 128], strides = [1, 1]} : vector<8x512xf32> to vector<8x128xf32>
    %103 = math.tanh %102 : vector<8x128xf32>
    %104 = vector.extract_strided_slice %89 {offsets = [0, 384], sizes = [8, 128], strides = [1, 1]} : vector<8x512xf32> to vector<8x128xf32>
    %105 = arith.negf %104 : vector<8x128xf32>
    %106 = math.exp %105 : vector<8x128xf32>
    %cst_30 = arith.constant 1.000000e+00 : f32
    %107 = vector.broadcast %cst_30 : f32 to vector<8x128xf32>
    %108 = arith.addf %107, %106 : vector<8x128xf32>
    %109 = arith.divf %107, %108 : vector<8x128xf32>
    %110 = arith.mulf %101, %80 : vector<8x128xf32>
    %111 = arith.mulf %95, %103 : vector<8x128xf32>
    %112 = arith.addf %110, %111 : vector<8x128xf32>
    %113 = math.tanh %112 : vector<8x128xf32>
    %114 = arith.mulf %109, %113 : vector<8x128xf32>
    %c3_i32 = arith.constant 3 : i32
    %c8_i32_31 = arith.constant 8 : i32
    %115 = arith.muli %c3_i32, %c8_i32_31 : i32
    %116 = tpu.assume_multiple %115, 8 : i32
    %117 = arith.index_cast %116 : i32 to index
    %c0_32 = arith.constant 0 : index
    %118 = vector.load %arg8[%117, %c0_32] : memref<64x512xf32, #tpu.memory_space<vmem>>, vector<8x512xf32>
    %119 = arith.truncf %114 : vector<8x128xf32> to vector<8x128xbf16>
    %cst_33 = arith.constant dense<0.000000e+00> : vector<8x512xf32>
    %120 = tpu.matmul %119, %16, %cst_33 {dimension_numbers = #tpu.dot_dimension_numbers<[1], [0], [0], [1], [0, 0, 1, 1], [], []>} : vector<8x128xbf16>, vector<128x512xbf16>, vector<8x512xf32> -> vector<8x512xf32>
    %121 = arith.addf %118, %120 : vector<8x512xf32>
    %122 = vector.extract_strided_slice %121 {offsets = [0, 0], sizes = [8, 128], strides = [1, 1]} : vector<8x512xf32> to vector<8x128xf32>
    %123 = arith.negf %122 : vector<8x128xf32>
    %124 = math.exp %123 : vector<8x128xf32>
    %cst_34 = arith.constant 1.000000e+00 : f32
    %125 = vector.broadcast %cst_34 : f32 to vector<8x128xf32>
    %126 = arith.addf %125, %124 : vector<8x128xf32>
    %127 = arith.divf %125, %126 : vector<8x128xf32>
    %128 = vector.extract_strided_slice %121 {offsets = [0, 128], sizes = [8, 128], strides = [1, 1]} : vector<8x512xf32> to vector<8x128xf32>
    %129 = arith.negf %128 : vector<8x128xf32>
    %130 = math.exp %129 : vector<8x128xf32>
    %cst_35 = arith.constant 1.000000e+00 : f32
    %131 = vector.broadcast %cst_35 : f32 to vector<8x128xf32>
    %132 = arith.addf %131, %130 : vector<8x128xf32>
    %133 = arith.divf %131, %132 : vector<8x128xf32>
    %134 = vector.extract_strided_slice %121 {offsets = [0, 256], sizes = [8, 128], strides = [1, 1]} : vector<8x512xf32> to vector<8x128xf32>
    %135 = math.tanh %134 : vector<8x128xf32>
    %136 = vector.extract_strided_slice %121 {offsets = [0, 384], sizes = [8, 128], strides = [1, 1]} : vector<8x512xf32> to vector<8x128xf32>
    %137 = arith.negf %136 : vector<8x128xf32>
    %138 = math.exp %137 : vector<8x128xf32>
    %cst_36 = arith.constant 1.000000e+00 : f32
    %139 = vector.broadcast %cst_36 : f32 to vector<8x128xf32>
    %140 = arith.addf %139, %138 : vector<8x128xf32>
    %141 = arith.divf %139, %140 : vector<8x128xf32>
    %142 = arith.mulf %133, %112 : vector<8x128xf32>
    %143 = arith.mulf %127, %135 : vector<8x128xf32>
    %144 = arith.addf %142, %143 : vector<8x128xf32>
    %145 = math.tanh %144 : vector<8x128xf32>
    %146 = arith.mulf %141, %145 : vector<8x128xf32>
    %c4_i32 = arith.constant 4 : i32
    %c8_i32_37 = arith.constant 8 : i32
    %147 = arith.muli %c4_i32, %c8_i32_37 : i32
    %148 = tpu.assume_multiple %147, 8 : i32
    %149 = arith.index_cast %148 : i32 to index
    %c0_38 = arith.constant 0 : index
    %150 = vector.load %arg8[%149, %c0_38] : memref<64x512xf32, #tpu.memory_space<vmem>>, vector<8x512xf32>
    %151 = arith.truncf %146 : vector<8x128xf32> to vector<8x128xbf16>
    %cst_39 = arith.constant dense<0.000000e+00> : vector<8x512xf32>
    %152 = tpu.matmul %151, %16, %cst_39 {dimension_numbers = #tpu.dot_dimension_numbers<[1], [0], [0], [1], [0, 0, 1, 1], [], []>} : vector<8x128xbf16>, vector<128x512xbf16>, vector<8x512xf32> -> vector<8x512xf32>
    %153 = arith.addf %150, %152 : vector<8x512xf32>
    %154 = vector.extract_strided_slice %153 {offsets = [0, 0], sizes = [8, 128], strides = [1, 1]} : vector<8x512xf32> to vector<8x128xf32>
    %155 = arith.negf %154 : vector<8x128xf32>
    %156 = math.exp %155 : vector<8x128xf32>
    %cst_40 = arith.constant 1.000000e+00 : f32
    %157 = vector.broadcast %cst_40 : f32 to vector<8x128xf32>
    %158 = arith.addf %157, %156 : vector<8x128xf32>
    %159 = arith.divf %157, %158 : vector<8x128xf32>
    %160 = vector.extract_strided_slice %153 {offsets = [0, 128], sizes = [8, 128], strides = [1, 1]} : vector<8x512xf32> to vector<8x128xf32>
    %161 = arith.negf %160 : vector<8x128xf32>
    %162 = math.exp %161 : vector<8x128xf32>
    %cst_41 = arith.constant 1.000000e+00 : f32
    %163 = vector.broadcast %cst_41 : f32 to vector<8x128xf32>
    %164 = arith.addf %163, %162 : vector<8x128xf32>
    %165 = arith.divf %163, %164 : vector<8x128xf32>
    %166 = vector.extract_strided_slice %153 {offsets = [0, 256], sizes = [8, 128], strides = [1, 1]} : vector<8x512xf32> to vector<8x128xf32>
    %167 = math.tanh %166 : vector<8x128xf32>
    %168 = vector.extract_strided_slice %153 {offsets = [0, 384], sizes = [8, 128], strides = [1, 1]} : vector<8x512xf32> to vector<8x128xf32>
    %169 = arith.negf %168 : vector<8x128xf32>
    %170 = math.exp %169 : vector<8x128xf32>
    %cst_42 = arith.constant 1.000000e+00 : f32
    %171 = vector.broadcast %cst_42 : f32 to vector<8x128xf32>
    %172 = arith.addf %171, %170 : vector<8x128xf32>
    %173 = arith.divf %171, %172 : vector<8x128xf32>
    %174 = arith.mulf %165, %144 : vector<8x128xf32>
    %175 = arith.mulf %159, %167 : vector<8x128xf32>
    %176 = arith.addf %174, %175 : vector<8x128xf32>
    %177 = math.tanh %176 : vector<8x128xf32>
    %178 = arith.mulf %173, %177 : vector<8x128xf32>
    %c5_i32 = arith.constant 5 : i32
    %c8_i32_43 = arith.constant 8 : i32
    %179 = arith.muli %c5_i32, %c8_i32_43 : i32
    %180 = tpu.assume_multiple %179, 8 : i32
    %181 = arith.index_cast %180 : i32 to index
    %c0_44 = arith.constant 0 : index
    %182 = vector.load %arg8[%181, %c0_44] : memref<64x512xf32, #tpu.memory_space<vmem>>, vector<8x512xf32>
    %183 = arith.truncf %178 : vector<8x128xf32> to vector<8x128xbf16>
    %cst_45 = arith.constant dense<0.000000e+00> : vector<8x512xf32>
    %184 = tpu.matmul %183, %16, %cst_45 {dimension_numbers = #tpu.dot_dimension_numbers<[1], [0], [0], [1], [0, 0, 1, 1], [], []>} : vector<8x128xbf16>, vector<128x512xbf16>, vector<8x512xf32> -> vector<8x512xf32>
    %185 = arith.addf %182, %184 : vector<8x512xf32>
    %186 = vector.extract_strided_slice %185 {offsets = [0, 0], sizes = [8, 128], strides = [1, 1]} : vector<8x512xf32> to vector<8x128xf32>
    %187 = arith.negf %186 : vector<8x128xf32>
    %188 = math.exp %187 : vector<8x128xf32>
    %cst_46 = arith.constant 1.000000e+00 : f32
    %189 = vector.broadcast %cst_46 : f32 to vector<8x128xf32>
    %190 = arith.addf %189, %188 : vector<8x128xf32>
    %191 = arith.divf %189, %190 : vector<8x128xf32>
    %192 = vector.extract_strided_slice %185 {offsets = [0, 128], sizes = [8, 128], strides = [1, 1]} : vector<8x512xf32> to vector<8x128xf32>
    %193 = arith.negf %192 : vector<8x128xf32>
    %194 = math.exp %193 : vector<8x128xf32>
    %cst_47 = arith.constant 1.000000e+00 : f32
    %195 = vector.broadcast %cst_47 : f32 to vector<8x128xf32>
    %196 = arith.addf %195, %194 : vector<8x128xf32>
    %197 = arith.divf %195, %196 : vector<8x128xf32>
    %198 = vector.extract_strided_slice %185 {offsets = [0, 256], sizes = [8, 128], strides = [1, 1]} : vector<8x512xf32> to vector<8x128xf32>
    %199 = math.tanh %198 : vector<8x128xf32>
    %200 = vector.extract_strided_slice %185 {offsets = [0, 384], sizes = [8, 128], strides = [1, 1]} : vector<8x512xf32> to vector<8x128xf32>
    %201 = arith.negf %200 : vector<8x128xf32>
    %202 = math.exp %201 : vector<8x128xf32>
    %cst_48 = arith.constant 1.000000e+00 : f32
    %203 = vector.broadcast %cst_48 : f32 to vector<8x128xf32>
    %204 = arith.addf %203, %202 : vector<8x128xf32>
    %205 = arith.divf %203, %204 : vector<8x128xf32>
    %206 = arith.mulf %197, %176 : vector<8x128xf32>
    %207 = arith.mulf %191, %199 : vector<8x128xf32>
    %208 = arith.addf %206, %207 : vector<8x128xf32>
    %209 = math.tanh %208 : vector<8x128xf32>
    %210 = arith.mulf %205, %209 : vector<8x128xf32>
    %c6_i32 = arith.constant 6 : i32
    %c8_i32_49 = arith.constant 8 : i32
    %211 = arith.muli %c6_i32, %c8_i32_49 : i32
    %212 = tpu.assume_multiple %211, 8 : i32
    %213 = arith.index_cast %212 : i32 to index
    %c0_50 = arith.constant 0 : index
    %214 = vector.load %arg8[%213, %c0_50] : memref<64x512xf32, #tpu.memory_space<vmem>>, vector<8x512xf32>
    %215 = arith.truncf %210 : vector<8x128xf32> to vector<8x128xbf16>
    %cst_51 = arith.constant dense<0.000000e+00> : vector<8x512xf32>
    %216 = tpu.matmul %215, %16, %cst_51 {dimension_numbers = #tpu.dot_dimension_numbers<[1], [0], [0], [1], [0, 0, 1, 1], [], []>} : vector<8x128xbf16>, vector<128x512xbf16>, vector<8x512xf32> -> vector<8x512xf32>
    %217 = arith.addf %214, %216 : vector<8x512xf32>
    %218 = vector.extract_strided_slice %217 {offsets = [0, 0], sizes = [8, 128], strides = [1, 1]} : vector<8x512xf32> to vector<8x128xf32>
    %219 = arith.negf %218 : vector<8x128xf32>
    %220 = math.exp %219 : vector<8x128xf32>
    %cst_52 = arith.constant 1.000000e+00 : f32
    %221 = vector.broadcast %cst_52 : f32 to vector<8x128xf32>
    %222 = arith.addf %221, %220 : vector<8x128xf32>
    %223 = arith.divf %221, %222 : vector<8x128xf32>
    %224 = vector.extract_strided_slice %217 {offsets = [0, 128], sizes = [8, 128], strides = [1, 1]} : vector<8x512xf32> to vector<8x128xf32>
    %225 = arith.negf %224 : vector<8x128xf32>
    %226 = math.exp %225 : vector<8x128xf32>
    %cst_53 = arith.constant 1.000000e+00 : f32
    %227 = vector.broadcast %cst_53 : f32 to vector<8x128xf32>
    %228 = arith.addf %227, %226 : vector<8x128xf32>
    %229 = arith.divf %227, %228 : vector<8x128xf32>
    %230 = vector.extract_strided_slice %217 {offsets = [0, 256], sizes = [8, 128], strides = [1, 1]} : vector<8x512xf32> to vector<8x128xf32>
    %231 = math.tanh %230 : vector<8x128xf32>
    %232 = vector.extract_strided_slice %217 {offsets = [0, 384], sizes = [8, 128], strides = [1, 1]} : vector<8x512xf32> to vector<8x128xf32>
    %233 = arith.negf %232 : vector<8x128xf32>
    %234 = math.exp %233 : vector<8x128xf32>
    %cst_54 = arith.constant 1.000000e+00 : f32
    %235 = vector.broadcast %cst_54 : f32 to vector<8x128xf32>
    %236 = arith.addf %235, %234 : vector<8x128xf32>
    %237 = arith.divf %235, %236 : vector<8x128xf32>
    %238 = arith.mulf %229, %208 : vector<8x128xf32>
    %239 = arith.mulf %223, %231 : vector<8x128xf32>
    %240 = arith.addf %238, %239 : vector<8x128xf32>
    %241 = math.tanh %240 : vector<8x128xf32>
    %242 = arith.mulf %237, %241 : vector<8x128xf32>
    %c7_i32 = arith.constant 7 : i32
    %c8_i32_55 = arith.constant 8 : i32
    %243 = arith.muli %c7_i32, %c8_i32_55 : i32
    %244 = tpu.assume_multiple %243, 8 : i32
    %245 = arith.index_cast %244 : i32 to index
    %c0_56 = arith.constant 0 : index
    %246 = vector.load %arg8[%245, %c0_56] : memref<64x512xf32, #tpu.memory_space<vmem>>, vector<8x512xf32>
    %247 = arith.truncf %242 : vector<8x128xf32> to vector<8x128xbf16>
    %cst_57 = arith.constant dense<0.000000e+00> : vector<8x512xf32>
    %248 = tpu.matmul %247, %16, %cst_57 {dimension_numbers = #tpu.dot_dimension_numbers<[1], [0], [0], [1], [0, 0, 1, 1], [], []>} : vector<8x128xbf16>, vector<128x512xbf16>, vector<8x512xf32> -> vector<8x512xf32>
    %249 = arith.addf %246, %248 : vector<8x512xf32>
    %250 = vector.extract_strided_slice %249 {offsets = [0, 0], sizes = [8, 128], strides = [1, 1]} : vector<8x512xf32> to vector<8x128xf32>
    %251 = arith.negf %250 : vector<8x128xf32>
    %252 = math.exp %251 : vector<8x128xf32>
    %cst_58 = arith.constant 1.000000e+00 : f32
    %253 = vector.broadcast %cst_58 : f32 to vector<8x128xf32>
    %254 = arith.addf %253, %252 : vector<8x128xf32>
    %255 = arith.divf %253, %254 : vector<8x128xf32>
    %256 = vector.extract_strided_slice %249 {offsets = [0, 128], sizes = [8, 128], strides = [1, 1]} : vector<8x512xf32> to vector<8x128xf32>
    %257 = arith.negf %256 : vector<8x128xf32>
    %258 = math.exp %257 : vector<8x128xf32>
    %cst_59 = arith.constant 1.000000e+00 : f32
    %259 = vector.broadcast %cst_59 : f32 to vector<8x128xf32>
    %260 = arith.addf %259, %258 : vector<8x128xf32>
    %261 = arith.divf %259, %260 : vector<8x128xf32>
    %262 = vector.extract_strided_slice %249 {offsets = [0, 256], sizes = [8, 128], strides = [1, 1]} : vector<8x512xf32> to vector<8x128xf32>
    %263 = math.tanh %262 : vector<8x128xf32>
    %264 = vector.extract_strided_slice %249 {offsets = [0, 384], sizes = [8, 128], strides = [1, 1]} : vector<8x512xf32> to vector<8x128xf32>
    %265 = arith.negf %264 : vector<8x128xf32>
    %266 = math.exp %265 : vector<8x128xf32>
    %cst_60 = arith.constant 1.000000e+00 : f32
    %267 = vector.broadcast %cst_60 : f32 to vector<8x128xf32>
    %268 = arith.addf %267, %266 : vector<8x128xf32>
    %269 = arith.divf %267, %268 : vector<8x128xf32>
    %270 = arith.mulf %261, %240 : vector<8x128xf32>
    %271 = arith.mulf %255, %263 : vector<8x128xf32>
    %272 = arith.addf %270, %271 : vector<8x128xf32>
    %273 = math.tanh %272 : vector<8x128xf32>
    %274 = arith.mulf %269, %273 : vector<8x128xf32>
    %c8_i32_61 = arith.constant 8 : i32
    %c0_62 = arith.constant 0 : index
    %c0_63 = arith.constant 0 : index
    %275 = vector.load %arg5[%c0_62, %c0_63] : memref<1x128xf32, #tpu.memory_space<vmem>>, vector<1x128xf32>
    %276 = vector.broadcast %275 : vector<1x128xf32> to vector<8x128xf32>
    %277 = arith.mulf %274, %276 : vector<8x128xf32>
    %cst_64 = arith.constant dense<0.000000e+00> : vector<8xf32>
    %278 = vector.multi_reduction <add>, %277, %cst_64 [1] : vector<8x128xf32> to vector<8xf32>
    %279 = vector.shape_cast %278 : vector<8xf32> to vector<8x1xf32>
    %c0_65 = arith.constant 0 : index
    %c0_66 = arith.constant 0 : index
    %280 = vector.load %arg6[%c0_65, %c0_66] : memref<1x1xf32, #tpu.memory_space<vmem>>, vector<1x1xf32>
    %281 = vector.broadcast %280 : vector<1x1xf32> to vector<8x1xf32>
    %282 = arith.addf %279, %281 : vector<8x1xf32>
    %283 = vector.extract_strided_slice %282 {offsets = [0, 0], sizes = [2, 1], strides = [1, 1]} : vector<8x1xf32> to vector<2x1xf32>
    %284 = arith.negf %283 : vector<2x1xf32>
    %285 = math.exp %284 : vector<2x1xf32>
    %cst_67 = arith.constant 1.000000e+00 : f32
    %286 = vector.broadcast %cst_67 : f32 to vector<2x1xf32>
    %287 = arith.addf %286, %285 : vector<2x1xf32>
    %288 = arith.divf %286, %287 : vector<2x1xf32>
    %c0_68 = arith.constant 0 : index
    %c0_69 = arith.constant 0 : index
    %289 = vector.load %arg7[%c0_68, %c0_69] : memref<2x1xf32, #tpu.memory_space<vmem>>, vector<2x1xf32>
    tpu.vector_store %arg7[%c0_68, %c0_69], %288 {strides = array<i32>} : memref<2x1xf32, #tpu.memory_space<vmem>>, vector<2x1xf32>,
    return
  }
}

</mosaic_0001>

<llo_original>
// kernel: tpu_custom_call.1
$region0: #{tpu_custom_call.1}
  #allocation0 [shape = 'u32[]', space=smem, size = 0x4, offset = 0x4, fixed_abs, tag = 'smem constant byte address 0x4 - core index']
  #allocation1 [shape = 'u32[144,128]{1,0:T(1,128)}', space=vmem, size = 0x12000, scoped, tag = 'internal scratch']
  #allocation2 [shape = 'f32[64,512]{1,0:T(8,128)}', space=vmem, size = 0x20000, scoped, tag = 'scratch operand']
  #allocation3 [shape = 'f32[1,1]{1,0:T(1,128)S(1)}', space=vmem, size = 0x200, scoped, tag = 'scoped memory for tpu_custom_call.1']
  %s0 = inlined_call_operand.vmem [shape: s32[64,1], index: 0, kind: input, shape index: {}]
  %s1 = inlined_call_operand.hbm [shape: bf16[1024,128], index: 1, kind: input, shape index: {}]
  %s2 = inlined_call_operand.hbm [shape: bf16[128,512], index: 2, kind: input, shape index: {}]
  %s3 = inlined_call_operand.hbm [shape: bf16[128,512], index: 3, kind: input, shape index: {}]
  %s4 = inlined_call_operand.vmem [shape: f32[1,512], index: 4, kind: input, shape index: {}]
  %s5 = inlined_call_operand.vmem [shape: f32[1,128], index: 5, kind: input, shape index: {}]
  %s6 = inlined_call_operand.<no memory space> [shape: f32[1,1], index: 6, kind: input, shape index: {}]
  %s7 = inlined_call_operand.vmem [shape: f32[2,1], index: 7, kind: output, shape index: {}]
  %s8 = sld [smem:[#allocation0]]
  $region50: #{tpu_custom_call.1} parent=0
    _
  %s10 = ssub.s32 1, %s8
  %s11 = scalar_select 0, %s10, %s8
  %v12 = vstv %s6
  %13 = vst [vmem:[#allocation3] sm:$0x1] %v12
  $region1: #{tpu_custom_call.1} parent=0
    #allocation4 [shape = 'u8[262144]{0}', space=vmem, size = 0x40000, scoped, tag = 'input window, operand 1, single buffered']
    #allocation5 [shape = 's32[1]{0}', space=sflag, size = 0x4, scoped, tag = 'scoped memory for tpu_custom_call.1']
    #allocation6 [shape = 'u8[131072]{0}', space=vmem, size = 0x20000, scoped, tag = 'input window, operand 2, single buffered']
    #allocation7 [shape = 's32[1]{0}', space=sflag, size = 0x4, scoped, tag = 'scoped memory for tpu_custom_call.1']
    #allocation8 [shape = 'u8[131072]{0}', space=vmem, size = 0x20000, scoped, tag = 'input window, operand 3, single buffered']
    %14 = vsyncpa [#allocation5], 0
    %15 = vsyncpa [#allocation7], 0
    // Predicated region
    $region2: #{tpu_custom_call.1} parent=1 // pred_check
      _
    $region3: #{tpu_custom_call.1} parent=1 // pred_check_branch
      %17 = sbr.rel (0) target = $region5
    $region4: #{tpu_custom_call.1} parent=1 // pred_region
      _
    $region5: #{tpu_custom_call.1} parent=1 // pred_fallthru
      _
    // Predicated region
    $region6: #{tpu_custom_call.1} parent=1 // pred_check
      _
    $region7: #{tpu_custom_call.1} parent=1 // pred_check_branch
      %19 = sbr.rel (0) target = $region9
    $region8: #{tpu_custom_call.1} parent=1 // pred_region
      %s21 = ssub.s32 8192, 8192
      %22 = vsyncadd [#allocation5], %s21
      %s23 = sshll.u32 [#allocation4], 4
      %s24 = int_to_ptr.vmem [resolvable:$true] %s23
      %29 = dma.hbm_to_vmem [thread:$0]  %s1, 8192, %s24, [#allocation5], 64, 64, 4
    $region9: #{tpu_custom_call.1} parent=1 // pred_fallthru
      _
    // Predicated region
    $region10: #{tpu_custom_call.1} parent=1 // pred_check
      _
    $region11: #{tpu_custom_call.1} parent=1 // pred_check_branch
      %31 = sbr.rel (0) target = $region13
    $region12: #{tpu_custom_call.1} parent=1 // pred_region
      %s33 = ssub.s32 4096, 4096
      %34 = vsyncadd [#allocation7], %s33
      %s35 = sshll.u32 [#allocation6], 4
      %s36 = int_to_ptr.vmem [resolvable:$true] %s35
      %41 = dma.hbm_to_vmem [thread:$0]  %s2, 4096, %s36, [#allocation7], 256, 256, 16
    $region13: #{tpu_custom_call.1} parent=1 // pred_fallthru
      _
    // Predicated region
    $region14: #{tpu_custom_call.1} parent=1 // pred_check
      _
    $region15: #{tpu_custom_call.1} parent=1 // pred_check_branch
      %43 = sbr.rel (0) target = $region17
    $region16: #{tpu_custom_call.1} parent=1 // pred_region
      %s45 = ssub.s32 4096, 4096
      %46 = vsyncadd [#allocation7], %s45
      %s47 = sshll.u32 [#allocation8], 4
      %s48 = int_to_ptr.vmem [resolvable:$true] %s47
      %53 = dma.hbm_to_vmem [thread:$0]  %s3, 4096, %s48, [#allocation7], 256, 256, 16
    $region17: #{tpu_custom_call.1} parent=1 // pred_fallthru
      _
    // Predicated region
    $region18: #{tpu_custom_call.1} parent=1 // pred_check
      _
    $region19: #{tpu_custom_call.1} parent=1 // pred_check_branch
      %55 = sbr.rel (0) target = $region21
    $region20: #{tpu_custom_call.1} parent=1 // pred_region
      _
    $region21: #{tpu_custom_call.1} parent=1 // pred_fallthru
      _
    // Predicated region
    $region22: #{tpu_custom_call.1} parent=1 // pred_check
      _
    $region23: #{tpu_custom_call.1} parent=1 // pred_check_branch
      %57 = sbr.rel (0) target = $region25
    $region24: #{tpu_custom_call.1} parent=1 // pred_region
      _
    $region25: #{tpu_custom_call.1} parent=1 // pred_fallthru
      _
    // Predicated region
    $region26: #{tpu_custom_call.1} parent=1 // pred_check
      _
    $region27: #{tpu_custom_call.1} parent=1 // pred_check_branch
      %59 = sbr.rel (0) target = $region29
    $region28: #{tpu_custom_call.1} parent=1 // pred_region
      _
    $region29: #{tpu_custom_call.1} parent=1 // pred_fallthru
      _
    // Predicated region
    $region30: #{tpu_custom_call.1} parent=1 // pred_check
      _
    $region31: #{tpu_custom_call.1} parent=1 // pred_check_branch
      %61 = sbr.rel (0) target = $region33
    $region32: #{tpu_custom_call.1} parent=1 // pred_region
      %62 = dma.done [#allocation5], 8192
    $region33: #{tpu_custom_call.1} parent=1 // pred_fallthru
      _
    // Predicated region
    $region34: #{tpu_custom_call.1} parent=1 // pred_check
      _
    $region35: #{tpu_custom_call.1} parent=1 // pred_check_branch
      %64 = sbr.rel (0) target = $region37
    $region36: #{tpu_custom_call.1} parent=1 // pred_region
      %65 = dma.done [#allocation7], 4096
    $region37: #{tpu_custom_call.1} parent=1 // pred_fallthru
      _
    // Predicated region
    $region38: #{tpu_custom_call.1} parent=1 // pred_check
      _
    $region39: #{tpu_custom_call.1} parent=1 // pred_check_branch
      %67 = sbr.rel (0) target = $region41
    $region40: #{tpu_custom_call.1} parent=1 // pred_region
      %68 = dma.done [#allocation7], 4096
    $region41: #{tpu_custom_call.1} parent=1 // pred_fallthru
      _
    %v70 = vld [vmem:[%s0] sm:$0xff]
    %v71 = vld [vmem:[%s0 + $0x8] sm:$0xff]
    %v72 = vld [vmem:[%s0 + $0x10] sm:$0xff]
    %v73 = vld [vmem:[%s0 + $0x18] sm:$0xff]
    %v74 = vld [vmem:[%s0 + $0x20] sm:$0xff]
    %v75 = vld [vmem:[%s0 + $0x28] sm:$0xff]
    %v76 = vld [vmem:[%s0 + $0x30] sm:$0xff]
    %v77 = vld [vmem:[%s0 + $0x38] sm:$0xff]
    %v78 = vlaneseq
    %v79 = vand.u32 %v78, 127
    %v80 = vadd.s32 %v79, 128
    %v81 = vadd.s32 %v79, 256
    %v82 = vadd.s32 %v79, 384
    %v83 = vadd.s32 %v79, 512
    %v84 = vadd.s32 %v79, 640
    %v85 = vadd.s32 %v79, 768
    %v86 = vadd.s32 %v79, 896
    %87 = vset.pattern.permute.xlu0 0
    %88 = vperm.xlu0 %87, %v70
    %v89 = vpop.permute.xlu0 %88
    %90 = vset.pattern.permute.xlu0 0
    %91 = vperm.xlu0 %90, %v71
    %v92 = vpop.permute.xlu0 %91
    %93 = vset.pattern.permute.xlu0 0
    %94 = vperm.xlu0 %93, %v72
    %v95 = vpop.permute.xlu0 %94
    %96 = vset.pattern.permute.xlu0 0
    %97 = vperm.xlu0 %96, %v73
    %v98 = vpop.permute.xlu0 %97
    %99 = vset.pattern.permute.xlu0 0
    %100 = vperm.xlu0 %99, %v74
    %v101 = vpop.permute.xlu0 %100
    %102 = vset.pattern.permute.xlu0 0
    %103 = vperm.xlu0 %102, %v75
    %v104 = vpop.permute.xlu0 %103
    %105 = vset.pattern.permute.xlu0 0
    %106 = vperm.xlu0 %105, %v76
    %v107 = vpop.permute.xlu0 %106
    %108 = vset.pattern.permute.xlu0 0
    %109 = vperm.xlu0 %108, %v77
    %v110 = vpop.permute.xlu0 %109
    %vm111 = vcmp.eq.s32.totalorder %v79, %v89
    %vm112 = vcmp.eq.s32.totalorder %v80, %v89
    %vm113 = vcmp.eq.s32.totalorder %v81, %v89
    %vm114 = vcmp.eq.s32.totalorder %v82, %v89
    %vm115 = vcmp.eq.s32.totalorder %v83, %v89
    %vm116 = vcmp.eq.s32.totalorder %v84, %v89
    %vm117 = vcmp.eq.s32.totalorder %v85, %v89
    %vm118 = vcmp.eq.s32.totalorder %v86, %v89
    %vm119 = vcmp.eq.s32.totalorder %v79, %v92
    %vm120 = vcmp.eq.s32.totalorder %v80, %v92
    %vm121 = vcmp.eq.s32.totalorder %v81, %v92
    %vm122 = vcmp.eq.s32.totalorder %v82, %v92
    %vm123 = vcmp.eq.s32.totalorder %v83, %v92
    %vm124 = vcmp.eq.s32.totalorder %v84, %v92
    %vm125 = vcmp.eq.s32.totalorder %v85, %v92
    %vm126 = vcmp.eq.s32.totalorder %v86, %v92
    %vm127 = vcmp.eq.s32.totalorder %v79, %v95
    %vm128 = vcmp.eq.s32.totalorder %v80, %v95
    %vm129 = vcmp.eq.s32.totalorder %v81, %v95
    %vm130 = vcmp.eq.s32.totalorder %v82, %v95
    %vm131 = vcmp.eq.s32.totalorder %v83, %v95
    %vm132 = vcmp.eq.s32.totalorder %v84, %v95
    %vm133 = vcmp.eq.s32.totalorder %v85, %v95
    %vm134 = vcmp.eq.s32.totalorder %v86, %v95
    %vm135 = vcmp.eq.s32.totalorder %v79, %v98
    %vm136 = vcmp.eq.s32.totalorder %v80, %v98
    %vm137 = vcmp.eq.s32.totalorder %v81, %v98
    %vm138 = vcmp.eq.s32.totalorder %v82, %v98
    %vm139 = vcmp.eq.s32.totalorder %v83, %v98
    %vm140 = vcmp.eq.s32.totalorder %v84, %v98
    %vm141 = vcmp.eq.s32.totalorder %v85, %v98
    %vm142 = vcmp.eq.s32.totalorder %v86, %v98
    %vm143 = vcmp.eq.s32.totalorder %v79, %v101
    %vm144 = vcmp.eq.s32.totalorder %v80, %v101
    %vm145 = vcmp.eq.s32.totalorder %v81, %v101
    %vm146 = vcmp.eq.s32.totalorder %v82, %v101
    %vm147 = vcmp.eq.s32.totalorder %v83, %v101
    %vm148 = vcmp.eq.s32.totalorder %v84, %v101
    %vm149 = vcmp.eq.s32.totalorder %v85, %v101
    %vm150 = vcmp.eq.s32.totalorder %v86, %v101
    %vm151 = vcmp.eq.s32.totalorder %v79, %v104
    %vm152 = vcmp.eq.s32.totalorder %v80, %v104
    %vm153 = vcmp.eq.s32.totalorder %v81, %v104
    %vm154 = vcmp.eq.s32.totalorder %v82, %v104
    %vm155 = vcmp.eq.s32.totalorder %v83, %v104
    %vm156 = vcmp.eq.s32.totalorder %v84, %v104
    %vm157 = vcmp.eq.s32.totalorder %v85, %v104
    %vm158 = vcmp.eq.s32.totalorder %v86, %v104
    %vm159 = vcmp.eq.s32.totalorder %v79, %v107
    %vm160 = vcmp.eq.s32.totalorder %v80, %v107
    %vm161 = vcmp.eq.s32.totalorder %v81, %v107
    %vm162 = vcmp.eq.s32.totalorder %v82, %v107
    %vm163 = vcmp.eq.s32.totalorder %v83, %v107
    %vm164 = vcmp.eq.s32.totalorder %v84, %v107
    %vm165 = vcmp.eq.s32.totalorder %v85, %v107
    %vm166 = vcmp.eq.s32.totalorder %v86, %v107
    %vm167 = vcmp.eq.s32.totalorder %v79, %v110
    %vm168 = vcmp.eq.s32.totalorder %v80, %v110
    %vm169 = vcmp.eq.s32.totalorder %v81, %v110
    %vm170 = vcmp.eq.s32.totalorder %v82, %v110
    %vm171 = vcmp.eq.s32.totalorder %v83, %v110
    %vm172 = vcmp.eq.s32.totalorder %v84, %v110
    %vm173 = vcmp.eq.s32.totalorder %v85, %v110
    %vm174 = vcmp.eq.s32.totalorder %v86, %v110
    %v175 = vsel %vm111, 1, 0
    %v176 = vsel %vm112, 1, 0
    %v177 = vsel %vm113, 1, 0
    %v178 = vsel %vm114, 1, 0
    %v179 = vsel %vm115, 1, 0
    %v180 = vsel %vm116, 1, 0
    %v181 = vsel %vm117, 1, 0
    %v182 = vsel %vm118, 1, 0
    %v183 = vsel %vm119, 1, 0
    %v184 = vsel %vm120, 1, 0
    %v185 = vsel %vm121, 1, 0
    %v186 = vsel %vm122, 1, 0
    %v187 = vsel %vm123, 1, 0
    %v188 = vsel %vm124, 1, 0
    %v189 = vsel %vm125, 1, 0
    %v190 = vsel %vm126, 1, 0
    %v191 = vsel %vm127, 1, 0
    %v192 = vsel %vm128, 1, 0
    %v193 = vsel %vm129, 1, 0
    %v194 = vsel %vm130, 1, 0
    %v195 = vsel %vm131, 1, 0
    %v196 = vsel %vm132, 1, 0
    %v197 = vsel %vm133, 1, 0
    %v198 = vsel %vm134, 1, 0
    %v199 = vsel %vm135, 1, 0
    %v200 = vsel %vm136, 1, 0
    %v201 = vsel %vm137, 1, 0
    %v202 = vsel %vm138, 1, 0
    %v203 = vsel %vm139, 1, 0
    %v204 = vsel %vm140, 1, 0
    %v205 = vsel %vm141, 1, 0
    %v206 = vsel %vm142, 1, 0
    %v207 = vsel %vm143, 1, 0
    %v208 = vsel %vm144, 1, 0
    %v209 = vsel %vm145, 1, 0
    %v210 = vsel %vm146, 1, 0
    %v211 = vsel %vm147, 1, 0
    %v212 = vsel %vm148, 1, 0
    %v213 = vsel %vm149, 1, 0
    %v214 = vsel %vm150, 1, 0
    %v215 = vsel %vm151, 1, 0
    %v216 = vsel %vm152, 1, 0
    %v217 = vsel %vm153, 1, 0
    %v218 = vsel %vm154, 1, 0
    %v219 = vsel %vm155, 1, 0
    %v220 = vsel %vm156, 1, 0
    %v221 = vsel %vm157, 1, 0
    %v222 = vsel %vm158, 1, 0
    %v223 = vsel %vm159, 1, 0
    %v224 = vsel %vm160, 1, 0
    %v225 = vsel %vm161, 1, 0
    %v226 = vsel %vm162, 1, 0
    %v227 = vsel %vm163, 1, 0
    %v228 = vsel %vm164, 1, 0
    %v229 = vsel %vm165, 1, 0
    %v230 = vsel %vm166, 1, 0
    %v231 = vsel %vm167, 1, 0
    %v232 = vsel %vm168, 1, 0
    %v233 = vsel %vm169, 1, 0
    %v234 = vsel %vm170, 1, 0
    %v235 = vsel %vm171, 1, 0
    %v236 = vsel %vm172, 1, 0
    %v237 = vsel %vm173, 1, 0
    %v238 = vsel %vm174, 1, 0
    %v239 = vcvt.s32.f32 %v175
    %v240 = vcvt.s32.f32 %v176
    %v241 = vcvt.s32.f32 %v177
    %v242 = vcvt.s32.f32 %v178
    %v243 = vcvt.s32.f32 %v179
    %v244 = vcvt.s32.f32 %v180
    %v245 = vcvt.s32.f32 %v181
    %v246 = vcvt.s32.f32 %v182
    %v247 = vcvt.s32.f32 %v183
    %v248 = vcvt.s32.f32 %v184
    %v249 = vcvt.s32.f32 %v185
    %v250 = vcvt.s32.f32 %v186
    %v251 = vcvt.s32.f32 %v187
    %v252 = vcvt.s32.f32 %v188
    %v253 = vcvt.s32.f32 %v189
    %v254 = vcvt.s32.f32 %v190
    %v255 = vcvt.s32.f32 %v191
    %v256 = vcvt.s32.f32 %v192
    %v257 = vcvt.s32.f32 %v193
    %v258 = vcvt.s32.f32 %v194
    %v259 = vcvt.s32.f32 %v195
    %v260 = vcvt.s32.f32 %v196
    %v261 = vcvt.s32.f32 %v197
    %v262 = vcvt.s32.f32 %v198
    %v263 = vcvt.s32.f32 %v199
    %v264 = vcvt.s32.f32 %v200
    %v265 = vcvt.s32.f32 %v201
    %v266 = vcvt.s32.f32 %v202
    %v267 = vcvt.s32.f32 %v203
    %v268 = vcvt.s32.f32 %v204
    %v269 = vcvt.s32.f32 %v205
    %v270 = vcvt.s32.f32 %v206
    %v271 = vcvt.s32.f32 %v207
    %v272 = vcvt.s32.f32 %v208
    %v273 = vcvt.s32.f32 %v209
    %v274 = vcvt.s32.f32 %v210
    %v275 = vcvt.s32.f32 %v211
    %v276 = vcvt.s32.f32 %v212
    %v277 = vcvt.s32.f32 %v213
    %v278 = vcvt.s32.f32 %v214
    %v279 = vcvt.s32.f32 %v215
    %v280 = vcvt.s32.f32 %v216
    %v281 = vcvt.s32.f32 %v217
    %v282 = vcvt.s32.f32 %v218
    %v283 = vcvt.s32.f32 %v219
    %v284 = vcvt.s32.f32 %v220
    %v285 = vcvt.s32.f32 %v221
    %v286 = vcvt.s32.f32 %v222
    %v287 = vcvt.s32.f32 %v223
    %v288 = vcvt.s32.f32 %v224
    %v289 = vcvt.s32.f32 %v225
    %v290 = vcvt.s32.f32 %v226
    %v291 = vcvt.s32.f32 %v227
    %v292 = vcvt.s32.f32 %v228
    %v293 = vcvt.s32.f32 %v229
    %v294 = vcvt.s32.f32 %v230
    %v295 = vcvt.s32.f32 %v231
    %v296 = vcvt.s32.f32 %v232
    %v297 = vcvt.s32.f32 %v233
    %v298 = vcvt.s32.f32 %v234
    %v299 = vcvt.s32.f32 %v235
    %v300 = vcvt.s32.f32 %v236
    %v301 = vcvt.s32.f32 %v237
    %v302 = vcvt.s32.f32 %v238
    %v303 = vpack.c.bf16 %v247, %v239
    %v304 = vpack.c.bf16 %v248, %v240
    %v305 = vpack.c.bf16 %v249, %v241
    %v306 = vpack.c.bf16 %v250, %v242
    %v307 = vpack.c.bf16 %v251, %v243
    %v308 = vpack.c.bf16 %v252, %v244
    %v309 = vpack.c.bf16 %v253, %v245
    %v310 = vpack.c.bf16 %v254, %v246
    %v311 = vpack.c.bf16 %v263, %v255
    %v312 = vpack.c.bf16 %v264, %v256
    %v313 = vpack.c.bf16 %v265, %v257
    %v314 = vpack.c.bf16 %v266, %v258
    %v315 = vpack.c.bf16 %v267, %v259
    %v316 = vpack.c.bf16 %v268, %v260
    %v317 = vpack.c.bf16 %v269, %v261
    %v318 = vpack.c.bf16 %v270, %v262
    %v319 = vpack.c.bf16 %v279, %v271
    %v320 = vpack.c.bf16 %v280, %v272
    %v321 = vpack.c.bf16 %v281, %v273
    %v322 = vpack.c.bf16 %v282, %v274
    %v323 = vpack.c.bf16 %v283, %v275
    %v324 = vpack.c.bf16 %v284, %v276
    %v325 = vpack.c.bf16 %v285, %v277
    %v326 = vpack.c.bf16 %v286, %v278
    %v327 = vpack.c.bf16 %v295, %v287
    %v328 = vpack.c.bf16 %v296, %v288
    %v329 = vpack.c.bf16 %v297, %v289
    %v330 = vpack.c.bf16 %v298, %v290
    %v331 = vpack.c.bf16 %v299, %v291
    %v332 = vpack.c.bf16 %v300, %v292
    %v333 = vpack.c.bf16 %v301, %v293
    %v334 = vpack.c.bf16 %v302, %v294
    %v335 = vld [vmem:[#allocation4] sm:$0xf]
    %v336 = vld [vmem:[#allocation4 + $0x4] sm:$0xf]
    %v337 = vld [vmem:[#allocation4 + $0x8] sm:$0xf]
    %v338 = vld [vmem:[#allocation4 + $0xc] sm:$0xf]
    %v339 = vld [vmem:[#allocation4 + $0x10] sm:$0xf]
    %v340 = vld [vmem:[#allocation4 + $0x14] sm:$0xf]
    %v341 = vld [vmem:[#allocation4 + $0x18] sm:$0xf]
    %v342 = vld [vmem:[#allocation4 + $0x1c] sm:$0xf]
    %v343 = vld [vmem:[#allocation4 + $0x20] sm:$0xf]
    %v344 = vld [vmem:[#allocation4 + $0x24] sm:$0xf]
    %v345 = vld [vmem:[#allocation4 + $0x28] sm:$0xf]
    %v346 = vld [vmem:[#allocation4 + $0x2c] sm:$0xf]
    %v347 = vld [vmem:[#allocation4 + $0x30] sm:$0xf]
    %v348 = vld [vmem:[#allocation4 + $0x34] sm:$0xf]
    %v349 = vld [vmem:[#allocation4 + $0x38] sm:$0xf]
    %v350 = vld [vmem:[#allocation4 + $0x3c] sm:$0xf]
    %v351 = vld [vmem:[#allocation4 + $0x40] sm:$0xf]
    %v352 = vld [vmem:[#allocation4 + $0x44] sm:$0xf]
    %v353 = vld [vmem:[#allocation4 + $0x48] sm:$0xf]
    %v354 = vld [vmem:[#allocation4 + $0x4c] sm:$0xf]
    %v355 = vld [vmem:[#allocation4 + $0x50] sm:$0xf]
    %v356 = vld [vmem:[#allocation4 + $0x54] sm:$0xf]
    %v357 = vld [vmem:[#allocation4 + $0x58] sm:$0xf]
    %v358 = vld [vmem:[#allocation4 + $0x5c] sm:$0xf]
    %v359 = vld [vmem:[#allocation4 + $0x60] sm:$0xf]
    %v360 = vld [vmem:[#allocation4 + $0x64] sm:$0xf]
    %v361 = vld [vmem:[#allocation4 + $0x68] sm:$0xf]
    %v362 = vld [vmem:[#allocation4 + $0x6c] sm:$0xf]
    %v363 = vld [vmem:[#allocation4 + $0x70] sm:$0xf]
    %v364 = vld [vmem:[#allocation4 + $0x74] sm:$0xf]
    %v365 = vld [vmem:[#allocation4 + $0x78] sm:$0xf]
    %v366 = vld [vmem:[#allocation4 + $0x7c] sm:$0xf]
    %v367 = vld [vmem:[#allocation4 + $0x80] sm:$0xf]
    %v368 = vld [vmem:[#allocation4 + $0x84] sm:$0xf]
    %v369 = vld [vmem:[#allocation4 + $0x88] sm:$0xf]
    %v370 = vld [vmem:[#allocation4 + $0x8c] sm:$0xf]
    %v371 = vld [vmem:[#allocation4 + $0x90] sm:$0xf]
    %v372 = vld [vmem:[#allocation4 + $0x94] sm:$0xf]
    %v373 = vld [vmem:[#allocation4 + $0x98] sm:$0xf]
    %v374 = vld [vmem:[#allocation4 + $0x9c] sm:$0xf]
    %v375 = vld [vmem:[#allocation4 + $0xa0] sm:$0xf]
    %v376 = vld [vmem:[#allocation4 + $0xa4] sm:$0xf]
    %v377 = vld [vmem:[#allocation4 + $0xa8] sm:$0xf]
    %v378 = vld [vmem:[#allocation4 + $0xac] sm:$0xf]
    %v379 = vld [vmem:[#allocation4 + $0xb0] sm:$0xf]
    %v380 = vld [vmem:[#allocation4 + $0xb4] sm:$0xf]
    %v381 = vld [vmem:[#allocation4 + $0xb8] sm:$0xf]
    %v382 = vld [vmem:[#allocation4 + $0xbc] sm:$0xf]
    %v383 = vld [vmem:[#allocation4 + $0xc0] sm:$0xf]
    %v384 = vld [vmem:[#allocation4 + $0xc4] sm:$0xf]
    %v385 = vld [vmem:[#allocation4 + $0xc8] sm:$0xf]
    %v386 = vld [vmem:[#allocation4 + $0xcc] sm:$0xf]
    %v387 = vld [vmem:[#allocation4 + $0xd0] sm:$0xf]
    %v388 = vld [vmem:[#allocation4 + $0xd4] sm:$0xf]
    %v389 = vld [vmem:[#allocation4 + $0xd8] sm:$0xf]
    %v390 = vld [vmem:[#allocation4 + $0xdc] sm:$0xf]
    %v391 = vld [vmem:[#allocation4 + $0xe0] sm:$0xf]
    %v392 = vld [vmem:[#allocation4 + $0xe4] sm:$0xf]
    %v393 = vld [vmem:[#allocation4 + $0xe8] sm:$0xf]
    %v394 = vld [vmem:[#allocation4 + $0xec] sm:$0xf]
    %v395 = vld [vmem:[#allocation4 + $0xf0] sm:$0xf]
    %v396 = vld [vmem:[#allocation4 + $0xf4] sm:$0xf]
    %v397 = vld [vmem:[#allocation4 + $0xf8] sm:$0xf]
    %v398 = vld [vmem:[#allocation4 + $0xfc] sm:$0xf]
    %v399 = vld [vmem:[#allocation4 + $0x100] sm:$0xf]
    %v400 = vld [vmem:[#allocation4 + $0x104] sm:$0xf]
    %v401 = vld [vmem:[#allocation4 + $0x108] sm:$0xf]
    %v402 = vld [vmem:[#allocation4 + $0x10c] sm:$0xf]
    %v403 = vld [vmem:[#allocation4 + $0x110] sm:$0xf]
    %v404 = vld [vmem:[#allocation4 + $0x114] sm:$0xf]
    %v405 = vld [vmem:[#allocation4 + $0x118] sm:$0xf]
    %v406 = vld [vmem:[#allocation4 + $0x11c] sm:$0xf]
    %v407 = vld [vmem:[#allocation4 + $0x120] sm:$0xf]
    %v408 = vld [vmem:[#allocation4 + $0x124] sm:$0xf]
    %v409 = vld [vmem:[#allocation4 + $0x128] sm:$0xf]
    %v410 = vld [vmem:[#allocation4 + $0x12c] sm:$0xf]
    %v411 = vld [vmem:[#allocation4 + $0x130] sm:$0xf]
    %v412 = vld [vmem:[#allocation4 + $0x134] sm:$0xf]
    %v413 = vld [vmem:[#allocation4 + $0x138] sm:$0xf]
    %v414 = vld [vmem:[#allocation4 + $0x13c] sm:$0xf]
    %v415 = vld [vmem:[#allocation4 + $0x140] sm:$0xf]
    %v416 = vld [vmem:[#allocation4 + $0x144] sm:$0xf]
    %v417 = vld [vmem:[#allocation4 + $0x148] sm:$0xf]
    %v418 = vld [vmem:[#allocation4 + $0x14c] sm:$0xf]
    %v419 = vld [vmem:[#allocation4 + $0x150] sm:$0xf]
    %v420 = vld [vmem:[#allocation4 + $0x154] sm:$0xf]
    %v421 = vld [vmem:[#allocation4 + $0x158] sm:$0xf]
    %v422 = vld [vmem:[#allocation4 + $0x15c] sm:$0xf]
    %v423 = vld [vmem:[#allocation4 + $0x160] sm:$0xf]
    %v424 = vld [vmem:[#allocation4 + $0x164] sm:$0xf]
    %v425 = vld [vmem:[#allocation4 + $0x168] sm:$0xf]
    %v426 = vld [vmem:[#allocation4 + $0x16c] sm:$0xf]
    %v427 = vld [vmem:[#allocation4 + $0x170] sm:$0xf]
    %v428 = vld [vmem:[#allocation4 + $0x174] sm:$0xf]
    %v429 = vld [vmem:[#allocation4 + $0x178] sm:$0xf]
    %v430 = vld [vmem:[#allocation4 + $0x17c] sm:$0xf]
    %v431 = vld [vmem:[#allocation4 + $0x180] sm:$0xf]
    %v432 = vld [vmem:[#allocation4 + $0x184] sm:$0xf]
    %v433 = vld [vmem:[#allocation4 + $0x188] sm:$0xf]
    %v434 = vld [vmem:[#allocation4 + $0x18c] sm:$0xf]
    %v435 = vld [vmem:[#allocation4 + $0x190] sm:$0xf]
    %v436 = vld [vmem:[#allocation4 + $0x194] sm:$0xf]
    %v437 = vld [vmem:[#allocation4 + $0x198] sm:$0xf]
    %v438 = vld [vmem:[#allocation4 + $0x19c] sm:$0xf]
    %v439 = vld [vmem:[#allocation4 + $0x1a0] sm:$0xf]
    %v440 = vld [vmem:[#allocation4 + $0x1a4] sm:$0xf]
    %v441 = vld [vmem:[#allocation4 + $0x1a8] sm:$0xf]
    %v442 = vld [vmem:[#allocation4 + $0x1ac] sm:$0xf]
    %v443 = vld [vmem:[#allocation4 + $0x1b0] sm:$0xf]
    %v444 = vld [vmem:[#allocation4 + $0x1b4] sm:$0xf]
    %v445 = vld [vmem:[#allocation4 + $0x1b8] sm:$0xf]
    %v446 = vld [vmem:[#allocation4 + $0x1bc] sm:$0xf]
    %v447 = vld [vmem:[#allocation4 + $0x1c0] sm:$0xf]
    %v448 = vld [vmem:[#allocation4 + $0x1c4] sm:$0xf]
    %v449 = vld [vmem:[#allocation4 + $0x1c8] sm:$0xf]
    %v450 = vld [vmem:[#allocation4 + $0x1cc] sm:$0xf]
    %v451 = vld [vmem:[#allocation4 + $0x1d0] sm:$0xf]
    %v452 = vld [vmem:[#allocation4 + $0x1d4] sm:$0xf]
    %v453 = vld [vmem:[#allocation4 + $0x1d8] sm:$0xf]
    %v454 = vld [vmem:[#allocation4 + $0x1dc] sm:$0xf]
    %v455 = vld [vmem:[#allocation4 + $0x1e0] sm:$0xf]
    %v456 = vld [vmem:[#allocation4 + $0x1e4] sm:$0xf]
    %v457 = vld [vmem:[#allocation4 + $0x1e8] sm:$0xf]
    %v458 = vld [vmem:[#allocation4 + $0x1ec] sm:$0xf]
    %v459 = vld [vmem:[#allocation4 + $0x1f0] sm:$0xf]
    %v460 = vld [vmem:[#allocation4 + $0x1f4] sm:$0xf]
    %v461 = vld [vmem:[#allocation4 + $0x1f8] sm:$0xf]
    %v462 = vld [vmem:[#allocation4 + $0x1fc] sm:$0xf]
    %v591 = vunpack.c.l.b16 %v335
    %v592 = vunpack.c.l.b16 %v336
    %v593 = vunpack.c.l.b16 %v337
    %v594 = vunpack.c.l.b16 %v338
    %v595 = vunpack.c.l.b16 %v339
    %v596 = vunpack.c.l.b16 %v340
    %v597 = vunpack.c.l.b16 %v341
    %v598 = vunpack.c.l.b16 %v342
    %v599 = vunpack.c.l.b16 %v343
    %v600 = vunpack.c.l.b16 %v344
    %v601 = vunpack.c.l.b16 %v345
    %v602 = vunpack.c.l.b16 %v346
    %v603 = vunpack.c.l.b16 %v347
    %v604 = vunpack.c.l.b16 %v348
    %v605 = vunpack.c.l.b16 %v349
    %v606 = vunpack.c.l.b16 %v350
    %v607 = vunpack.c.l.b16 %v351
    %v608 = vunpack.c.l.b16 %v352
    %v609 = vunpack.c.l.b16 %v353
    %v610 = vunpack.c.l.b16 %v354
    %v611 = vunpack.c.l.b16 %v355
    %v612 = vunpack.c.l.b16 %v356
    %v613 = vunpack.c.l.b16 %v357
    %v614 = vunpack.c.l.b16 %v358
    %v615 = vunpack.c.l.b16 %v359
    %v616 = vunpack.c.l.b16 %v360
    %v617 = vunpack.c.l.b16 %v361
    %v618 = vunpack.c.l.b16 %v362
    %v619 = vunpack.c.l.b16 %v363
    %v620 = vunpack.c.l.b16 %v364
    %v621 = vunpack.c.l.b16 %v365
    %v622 = vunpack.c.l.b16 %v366
    %v623 = vunpack.c.l.b16 %v367
    %v624 = vunpack.c.l.b16 %v368
    %v625 = vunpack.c.l.b16 %v369
    %v626 = vunpack.c.l.b16 %v370
    %v627 = vunpack.c.l.b16 %v371
    %v628 = vunpack.c.l.b16 %v372
    %v629 = vunpack.c.l.b16 %v373
    %v630 = vunpack.c.l.b16 %v374
    %v631 = vunpack.c.l.b16 %v375
    %v632 = vunpack.c.l.b16 %v376
    %v633 = vunpack.c.l.b16 %v377
    %v634 = vunpack.c.l.b16 %v378
    %v635 = vunpack.c.l.b16 %v379
    %v636 = vunpack.c.l.b16 %v380
    %v637 = vunpack.c.l.b16 %v381
    %v638 = vunpack.c.l.b16 %v382
    %v639 = vunpack.c.l.b16 %v383
    %v640 = vunpack.c.l.b16 %v384
    %v641 = vunpack.c.l.b16 %v385
    %v642 = vunpack.c.l.b16 %v386
    %v643 = vunpack.c.l.b16 %v387
    %v644 = vunpack.c.l.b16 %v388
    %v645 = vunpack.c.l.b16 %v389
    %v646 = vunpack.c.l.b16 %v390
    %v647 = vunpack.c.l.b16 %v391
    %v648 = vunpack.c.l.b16 %v392
    %v649 = vunpack.c.l.b16 %v393
    %v650 = vunpack.c.l.b16 %v394
    %v651 = vunpack.c.l.b16 %v395
    %v652 = vunpack.c.l.b16 %v396
    %v653 = vunpack.c.l.b16 %v397
    %v654 = vunpack.c.l.b16 %v398
    %v655 = vunpack.c.l.b16 %v399
    %v656 = vunpack.c.l.b16 %v400
    %v657 = vunpack.c.l.b16 %v401
    %v658 = vunpack.c.l.b16 %v402
    %v659 = vunpack.c.l.b16 %v403
    %v660 = vunpack.c.l.b16 %v404
    %v661 = vunpack.c.l.b16 %v405
    %v662 = vunpack.c.l.b16 %v406
    %v663 = vunpack.c.l.b16 %v407
    %v664 = vunpack.c.l.b16 %v408
    %v665 = vunpack.c.l.b16 %v409
    %v666 = vunpack.c.l.b16 %v410
    %v667 = vunpack.c.l.b16 %v411
    %v668 = vunpack.c.l.b16 %v412
    %v669 = vunpack.c.l.b16 %v413
    %v670 = vunpack.c.l.b16 %v414
    %v671 = vunpack.c.l.b16 %v415
    %v672 = vunpack.c.l.b16 %v416
    %v673 = vunpack.c.l.b16 %v417
    %v674 = vunpack.c.l.b16 %v418
    %v675 = vunpack.c.l.b16 %v419
    %v676 = vunpack.c.l.b16 %v420
    %v677 = vunpack.c.l.b16 %v421
    %v678 = vunpack.c.l.b16 %v422
    %v679 = vunpack.c.l.b16 %v423
    %v680 = vunpack.c.l.b16 %v424
    %v681 = vunpack.c.l.b16 %v425
    %v682 = vunpack.c.l.b16 %v426
    %v683 = vunpack.c.l.b16 %v427
    %v684 = vunpack.c.l.b16 %v428
    %v685 = vunpack.c.l.b16 %v429
    %v686 = vunpack.c.l.b16 %v430
    %v687 = vunpack.c.l.b16 %v431
    %v688 = vunpack.c.l.b16 %v432
    %v689 = vunpack.c.l.b16 %v433
    %v690 = vunpack.c.l.b16 %v434
    %v691 = vunpack.c.l.b16 %v435
    %v692 = vunpack.c.l.b16 %v436
    %v693 = vunpack.c.l.b16 %v437
    %v694 = vunpack.c.l.b16 %v438
    %v695 = vunpack.c.l.b16 %v439
    %v696 = vunpack.c.l.b16 %v440
    %v697 = vunpack.c.l.b16 %v441
    %v698 = vunpack.c.l.b16 %v442
    %v699 = vunpack.c.l.b16 %v443
    %v700 = vunpack.c.l.b16 %v444
    %v701 = vunpack.c.l.b16 %v445
    %v702 = vunpack.c.l.b16 %v446
    %v703 = vunpack.c.l.b16 %v447
    %v704 = vunpack.c.l.b16 %v448
    %v705 = vunpack.c.l.b16 %v449
    %v706 = vunpack.c.l.b16 %v450
    %v707 = vunpack.c.l.b16 %v451
    %v708 = vunpack.c.l.b16 %v452
    %v709 = vunpack.c.l.b16 %v453
    %v710 = vunpack.c.l.b16 %v454
    %v711 = vunpack.c.l.b16 %v455
    %v712 = vunpack.c.l.b16 %v456
    %v713 = vunpack.c.l.b16 %v457
    %v714 = vunpack.c.l.b16 %v458
    %v715 = vunpack.c.l.b16 %v459
    %v716 = vunpack.c.l.b16 %v460
    %v717 = vunpack.c.l.b16 %v461
    %v718 = vunpack.c.l.b16 %v462
    %v719 = vpack.c.b16 %v592, %v591
    %v720 = vpack.c.b16 %v594, %v593
    %v721 = vpack.c.b16 %v596, %v595
    %v722 = vpack.c.b16 %v598, %v597
    %v723 = vpack.c.b16 %v600, %v599
    %v724 = vpack.c.b16 %v602, %v601
    %v725 = vpack.c.b16 %v604, %v603
    %v726 = vpack.c.b16 %v606, %v605
    %v727 = vpack.c.b16 %v608, %v607
    %v728 = vpack.c.b16 %v610, %v609
    %v729 = vpack.c.b16 %v612, %v611
    %v730 = vpack.c.b16 %v614, %v613
    %v731 = vpack.c.b16 %v616, %v615
    %v732 = vpack.c.b16 %v618, %v617
    %v733 = vpack.c.b16 %v620, %v619
    %v734 = vpack.c.b16 %v622, %v621
    %v735 = vpack.c.b16 %v624, %v623
    %v736 = vpack.c.b16 %v626, %v625
    %v737 = vpack.c.b16 %v628, %v627
    %v738 = vpack.c.b16 %v630, %v629
    %v739 = vpack.c.b16 %v632, %v631
    %v740 = vpack.c.b16 %v634, %v633
    %v741 = vpack.c.b16 %v636, %v635
    %v742 = vpack.c.b16 %v638, %v637
    %v743 = vpack.c.b16 %v640, %v639
    %v744 = vpack.c.b16 %v642, %v641
    %v745 = vpack.c.b16 %v644, %v643
    %v746 = vpack.c.b16 %v646, %v645
    %v747 = vpack.c.b16 %v648, %v647
    %v748 = vpack.c.b16 %v650, %v649
    %v749 = vpack.c.b16 %v652, %v651
    %v750 = vpack.c.b16 %v654, %v653
    %v751 = vpack.c.b16 %v656, %v655
    %v752 = vpack.c.b16 %v658, %v657
    %v753 = vpack.c.b16 %v660, %v659
    %v754 = vpack.c.b16 %v662, %v661
    %v755 = vpack.c.b16 %v664, %v663
    %v756 = vpack.c.b16 %v666, %v665
    %v757 = vpack.c.b16 %v668, %v667
    %v758 = vpack.c.b16 %v670, %v669
    %v759 = vpack.c.b16 %v672, %v671
    %v760 = vpack.c.b16 %v674, %v673
    %v761 = vpack.c.b16 %v676, %v675
    %v762 = vpack.c.b16 %v678, %v677
    %v763 = vpack.c.b16 %v680, %v679
    %v764 = vpack.c.b16 %v682, %v681
    %v765 = vpack.c.b16 %v684, %v683
    %v766 = vpack.c.b16 %v686, %v685
    %v767 = vpack.c.b16 %v688, %v687
    %v768 = vpack.c.b16 %v690, %v689
    %v769 = vpack.c.b16 %v692, %v691
    %v770 = vpack.c.b16 %v694, %v693
    %v771 = vpack.c.b16 %v696, %v695
    %v772 = vpack.c.b16 %v698, %v697
    %v773 = vpack.c.b16 %v700, %v699
    %v774 = vpack.c.b16 %v702, %v701
    %v775 = vpack.c.b16 %v704, %v703
    %v776 = vpack.c.b16 %v706, %v705
    %v777 = vpack.c.b16 %v708, %v707
    %v778 = vpack.c.b16 %v710, %v709
    %v779 = vpack.c.b16 %v712, %v711
    %v780 = vpack.c.b16 %v714, %v713
    %v781 = vpack.c.b16 %v716, %v715
    %v782 = vpack.c.b16 %v718, %v717
    %847 = vmatprep.subr.bf16.mxu0 0
    %848 = vmatpush1.bf16.msra.mxu0 %v719
    %849 = vmatprep.subr.bf16.mxu0 0
    %850 = vmatpush1.bf16.msra.mxu0 %v720
    %851 = vmatprep.subr.bf16.mxu0 0
    %852 = vmatpush1.bf16.msra.mxu0 %v721
    %853 = vmatprep.subr.bf16.mxu0 0
    %854 = vmatpush1.bf16.msra.mxu0 %v722
    %855 = vmatprep.subr.bf16.mxu0 0
    %856 = vmatpush1.bf16.msra.mxu0 %v723
    %857 = vmatprep.subr.bf16.mxu0 0
    %858 = vmatpush1.bf16.msra.mxu0 %v724
    %859 = vmatprep.subr.bf16.mxu0 0
    %860 = vmatpush1.bf16.msra.mxu0 %v725
    %861 = vmatprep.subr.bf16.mxu0 0
    %862 = vmatpush1.bf16.msra.mxu0 %v726
    %863 = vmatprep.subr.bf16.mxu0 0
    %864 = vmatpush1.bf16.msra.mxu0 %v727
    %865 = vmatprep.subr.bf16.mxu0 0
    %866 = vmatpush1.bf16.msra.mxu0 %v728
    %867 = vmatprep.subr.bf16.mxu0 0
    %868 = vmatpush1.bf16.msra.mxu0 %v729
    %869 = vmatprep.subr.bf16.mxu0 0
    %870 = vmatpush1.bf16.msra.mxu0 %v730
    %871 = vmatprep.subr.bf16.mxu0 0
    %872 = vmatpush1.bf16.msra.mxu0 %v731
    %873 = vmatprep.subr.bf16.mxu0 0
    %874 = vmatpush1.bf16.msra.mxu0 %v732
    %875 = vmatprep.subr.bf16.mxu0 0
    %876 = vmatpush1.bf16.msra.mxu0 %v733
    %877 = vmatprep.subr.bf16.mxu0 0
    %878 = vmatpush1.bf16.msra.mxu0 %v734
    %879 = vmatprep.mubr.bf16.mxu0 %v304
    %880 = vmatmul.mubr.bf16.gmra.mrb[0].mxu0 %v303
    %v881 = vpop.f32.mrb[0].mxu0
    %v882 = vadd.f32 0.0, %v881
    %v883 = vpop.f32.mrb[0].mxu0
    %v884 = vpop.f32.mrb[0].mxu0
    %v885 = vadd.f32 0.0, %v884
    %v886 = vpop.f32.mrb[0].mxu0
    %887 = vmatprep.mubr.bf16.mxu0 %v312
    %888 = vmatmul.mubr.bf16.gmra.mrb[0].mxu0 %v311
    %v889 = vpop.f32.mrb[0].mxu0
    %v890 = vadd.f32 0.0, %v889
    %v891 = vpop.f32.mrb[0].mxu0
    %v892 = vpop.f32.mrb[0].mxu0
    %v893 = vadd.f32 0.0, %v892
    %v894 = vpop.f32.mrb[0].mxu0
    %895 = vmatprep.mubr.bf16.mxu0 %v320
    %896 = vmatmul.mubr.bf16.gmra.mrb[0].mxu0 %v319
    %v897 = vpop.f32.mrb[0].mxu0
    %v898 = vadd.f32 0.0, %v897
    %v899 = vpop.f32.mrb[0].mxu0
    %v900 = vpop.f32.mrb[0].mxu0
    %v901 = vadd.f32 0.0, %v900
    %v902 = vpop.f32.mrb[0].mxu0
    %903 = vmatprep.mubr.bf16.mxu0 %v328
    %904 = vmatmul.mubr.bf16.gmra.mrb[0].mxu0 %v327
    %v905 = vpop.f32.mrb[0].mxu0
    %v906 = vadd.f32 0.0, %v905
    %v907 = vpop.f32.mrb[0].mxu0
    %v908 = vpop.f32.mrb[0].mxu0
    %v909 = vadd.f32 0.0, %v908
    %v910 = vpop.f32.mrb[0].mxu0
    %911 = vdwg.mxu0
    %912 = vmatprep.subr.bf16.mxu0 0
    %913 = vmatpush1.bf16.msra.mxu0 %v735
    %914 = vmatprep.subr.bf16.mxu0 0
    %915 = vmatpush1.bf16.msra.mxu0 %v736
    %916 = vmatprep.subr.bf16.mxu0 0
    %917 = vmatpush1.bf16.msra.mxu0 %v737
    %918 = vmatprep.subr.bf16.mxu0 0
    %919 = vmatpush1.bf16.msra.mxu0 %v738
    %920 = vmatprep.subr.bf16.mxu0 0
    %921 = vmatpush1.bf16.msra.mxu0 %v739
    %922 = vmatprep.subr.bf16.mxu0 0
    %923 = vmatpush1.bf16.msra.mxu0 %v740
    %924 = vmatprep.subr.bf16.mxu0 0
    %925 = vmatpush1.bf16.msra.mxu0 %v741
    %926 = vmatprep.subr.bf16.mxu0 0
    %927 = vmatpush1.bf16.msra.mxu0 %v742
    %928 = vmatprep.subr.bf16.mxu0 0
    %929 = vmatpush1.bf16.msra.mxu0 %v743
    %930 = vmatprep.subr.bf16.mxu0 0
    %931 = vmatpush1.bf16.msra.mxu0 %v744
    %932 = vmatprep.subr.bf16.mxu0 0
    %933 = vmatpush1.bf16.msra.mxu0 %v745
    %934 = vmatprep.subr.bf16.mxu0 0
    %935 = vmatpush1.bf16.msra.mxu0 %v746
    %936 = vmatprep.subr.bf16.mxu0 0
    %937 = vmatpush1.bf16.msra.mxu0 %v747
    %938 = vmatprep.subr.bf16.mxu0 0
    %939 = vmatpush1.bf16.msra.mxu0 %v748
    %940 = vmatprep.subr.bf16.mxu0 0
    %941 = vmatpush1.bf16.msra.mxu0 %v749
    %942 = vmatprep.subr.bf16.mxu0 0
    %943 = vmatpush1.bf16.msra.mxu0 %v750
    %944 = vmatprep.mubr.bf16.mxu0 %v306
    %945 = vmatmul.mubr.bf16.gmra.mrb[0].mxu0 %v305
    %v946 = vpop.f32.mrb[0].mxu0
    %v947 = vadd.f32 %v882, %v946
    %v948 = vpop.f32.mrb[0].mxu0
    %v949 = vpop.f32.mrb[0].mxu0
    %v950 = vadd.f32 %v885, %v949
    %v951 = vpop.f32.mrb[0].mxu0
    %952 = vmatprep.mubr.bf16.mxu0 %v314
    %953 = vmatmul.mubr.bf16.gmra.mrb[0].mxu0 %v313
    %v954 = vpop.f32.mrb[0].mxu0
    %v955 = vadd.f32 %v890, %v954
    %v956 = vpop.f32.mrb[0].mxu0
    %v957 = vpop.f32.mrb[0].mxu0
    %v958 = vadd.f32 %v893, %v957
    %v959 = vpop.f32.mrb[0].mxu0
    %960 = vmatprep.mubr.bf16.mxu0 %v322
    %961 = vmatmul.mubr.bf16.gmra.mrb[0].mxu0 %v321
    %v962 = vpop.f32.mrb[0].mxu0
    %v963 = vadd.f32 %v898, %v962
    %v964 = vpop.f32.mrb[0].mxu0
    %v965 = vpop.f32.mrb[0].mxu0
    %v966 = vadd.f32 %v901, %v965
    %v967 = vpop.f32.mrb[0].mxu0
    %968 = vmatprep.mubr.bf16.mxu0 %v330
    %969 = vmatmul.mubr.bf16.gmra.mrb[0].mxu0 %v329
    %v970 = vpop.f32.mrb[0].mxu0
    %v971 = vadd.f32 %v906, %v970
    %v972 = vpop.f32.mrb[0].mxu0
    %v973 = vpop.f32.mrb[0].mxu0
    %v974 = vadd.f32 %v909, %v973
    %v975 = vpop.f32.mrb[0].mxu0
    %976 = vdwg.mxu0
    %977 = vmatprep.subr.bf16.mxu0 0
    %978 = vmatpush1.bf16.msra.mxu0 %v751
    %979 = vmatprep.subr.bf16.mxu0 0
    %980 = vmatpush1.bf16.msra.mxu0 %v752
    %981 = vmatprep.subr.bf16.mxu0 0
    %982 = vmatpush1.bf16.msra.mxu0 %v753
    %983 = vmatprep.subr.bf16.mxu0 0
    %984 = vmatpush1.bf16.msra.mxu0 %v754
    %985 = vmatprep.subr.bf16.mxu0 0
    %986 = vmatpush1.bf16.msra.mxu0 %v755
    %987 = vmatprep.subr.bf16.mxu0 0
    %988 = vmatpush1.bf16.msra.mxu0 %v756
    %989 = vmatprep.subr.bf16.mxu0 0
    %990 = vmatpush1.bf16.msra.mxu0 %v757
    %991 = vmatprep.subr.bf16.mxu0 0
    %992 = vmatpush1.bf16.msra.mxu0 %v758
    %993 = vmatprep.subr.bf16.mxu0 0
    %994 = vmatpush1.bf16.msra.mxu0 %v759
    %995 = vmatprep.subr.bf16.mxu0 0
    %996 = vmatpush1.bf16.msra.mxu0 %v760
    %997 = vmatprep.subr.bf16.mxu0 0
    %998 = vmatpush1.bf16.msra.mxu0 %v761
    %999 = vmatprep.subr.bf16.mxu0 0
    %1000 = vmatpush1.bf16.msra.mxu0 %v762
    %1001 = vmatprep.subr.bf16.mxu0 0
    %1002 = vmatpush1.bf16.msra.mxu0 %v763
    %1003 = vmatprep.subr.bf16.mxu0 0
    %1004 = vmatpush1.bf16.msra.mxu0 %v764
    %1005 = vmatprep.subr.bf16.mxu0 0
    %1006 = vmatpush1.bf16.msra.mxu0 %v765
    %1007 = vmatprep.subr.bf16.mxu0 0
    %1008 = vmatpush1.bf16.msra.mxu0 %v766
    %1009 = vmatprep.mubr.bf16.mxu0 %v308
    %1010 = vmatmul.mubr.bf16.gmra.mrb[0].mxu0 %v307
    %v1011 = vpop.f32.mrb[0].mxu0
    %v1012 = vadd.f32 %v947, %v1011
    %v1013 = vpop.f32.mrb[0].mxu0
    %v1014 = vpop.f32.mrb[0].mxu0
    %v1015 = vadd.f32 %v950, %v1014
    %v1016 = vpop.f32.mrb[0].mxu0
    %1017 = vmatprep.mubr.bf16.mxu0 %v316
    %1018 = vmatmul.mubr.bf16.gmra.mrb[0].mxu0 %v315
    %v1019 = vpop.f32.mrb[0].mxu0
    %v1020 = vadd.f32 %v955, %v1019
    %v1021 = vpop.f32.mrb[0].mxu0
    %v1022 = vpop.f32.mrb[0].mxu0
    %v1023 = vadd.f32 %v958, %v1022
    %v1024 = vpop.f32.mrb[0].mxu0
    %1025 = vmatprep.mubr.bf16.mxu0 %v324
    %1026 = vmatmul.mubr.bf16.gmra.mrb[0].mxu0 %v323
    %v1027 = vpop.f32.mrb[0].mxu0
    %v1028 = vadd.f32 %v963, %v1027
    %v1029 = vpop.f32.mrb[0].mxu0
    %v1030 = vpop.f32.mrb[0].mxu0
    %v1031 = vadd.f32 %v966, %v1030
    %v1032 = vpop.f32.mrb[0].mxu0
    %1033 = vmatprep.mubr.bf16.mxu0 %v332
    %1034 = vmatmul.mubr.bf16.gmra.mrb[0].mxu0 %v331
    %v1035 = vpop.f32.mrb[0].mxu0
    %v1036 = vadd.f32 %v971, %v1035
    %v1037 = vpop.f32.mrb[0].mxu0
    %v1038 = vpop.f32.mrb[0].mxu0
    %v1039 = vadd.f32 %v974, %v1038
    %v1040 = vpop.f32.mrb[0].mxu0
    %1041 = vdwg.mxu0
    %1042 = vmatprep.subr.bf16.mxu0 0
    %1043 = vmatpush1.bf16.msra.mxu0 %v767
    %1044 = vmatprep.subr.bf16.mxu0 0
    %1045 = vmatpush1.bf16.msra.mxu0 %v768
    %1046 = vmatprep.subr.bf16.mxu0 0
    %1047 = vmatpush1.bf16.msra.mxu0 %v769
    %1048 = vmatprep.subr.bf16.mxu0 0
    %1049 = vmatpush1.bf16.msra.mxu0 %v770
    %1050 = vmatprep.subr.bf16.mxu0 0
    %1051 = vmatpush1.bf16.msra.mxu0 %v771
    %1052 = vmatprep.subr.bf16.mxu0 0
    %1053 = vmatpush1.bf16.msra.mxu0 %v772
    %1054 = vmatprep.subr.bf16.mxu0 0
    %1055 = vmatpush1.bf16.msra.mxu0 %v773
    %1056 = vmatprep.subr.bf16.mxu0 0
    %1057 = vmatpush1.bf16.msra.mxu0 %v774
    %1058 = vmatprep.subr.bf16.mxu0 0
    %1059 = vmatpush1.bf16.msra.mxu0 %v775
    %1060 = vmatprep.subr.bf16.mxu0 0
    %1061 = vmatpush1.bf16.msra.mxu0 %v776
    %1062 = vmatprep.subr.bf16.mxu0 0
    %1063 = vmatpush1.bf16.msra.mxu0 %v777
    %1064 = vmatprep.subr.bf16.mxu0 0
    %1065 = vmatpush1.bf16.msra.mxu0 %v778
    %1066 = vmatprep.subr.bf16.mxu0 0
    %1067 = vmatpush1.bf16.msra.mxu0 %v779
    %1068 = vmatprep.subr.bf16.mxu0 0
    %1069 = vmatpush1.bf16.msra.mxu0 %v780
    %1070 = vmatprep.subr.bf16.mxu0 0
    %1071 = vmatpush1.bf16.msra.mxu0 %v781
    %1072 = vmatprep.subr.bf16.mxu0 0
    %1073 = vmatpush1.bf16.msra.mxu0 %v782
    %1074 = vmatprep.mubr.bf16.mxu0 %v310
    %1075 = vmatmul.mubr.bf16.gmra.mrb[0].mxu0 %v309
    %v1076 = vpop.f32.mrb[0].mxu0
    %v1077 = vadd.f32 %v1012, %v1076
    %v1078 = vpop.f32.mrb[0].mxu0
    %v1079 = vpop.f32.mrb[0].mxu0
    %v1080 = vadd.f32 %v1015, %v1079
    %v1081 = vpop.f32.mrb[0].mxu0
    %1082 = vmatprep.mubr.bf16.mxu0 %v318
    %1083 = vmatmul.mubr.bf16.gmra.mrb[0].mxu0 %v317
    %v1084 = vpop.f32.mrb[0].mxu0
    %v1085 = vadd.f32 %v1020, %v1084
    %v1086 = vpop.f32.mrb[0].mxu0
    %v1087 = vpop.f32.mrb[0].mxu0
    %v1088 = vadd.f32 %v1023, %v1087
    %v1089 = vpop.f32.mrb[0].mxu0
    %1090 = vmatprep.mubr.bf16.mxu0 %v326
    %1091 = vmatmul.mubr.bf16.gmra.mrb[0].mxu0 %v325
    %v1092 = vpop.f32.mrb[0].mxu0
    %v1093 = vadd.f32 %v1028, %v1092
    %v1094 = vpop.f32.mrb[0].mxu0
    %v1095 = vpop.f32.mrb[0].mxu0
    %v1096 = vadd.f32 %v1031, %v1095
    %v1097 = vpop.f32.mrb[0].mxu0
    %1098 = vmatprep.mubr.bf16.mxu0 %v334
    %1099 = vmatmul.mubr.bf16.gmra.mrb[0].mxu0 %v333
    %v1100 = vpop.f32.mrb[0].mxu0
    %v1101 = vadd.f32 %v1036, %v1100
    %v1102 = vpop.f32.mrb[0].mxu0
    %v1103 = vpop.f32.mrb[0].mxu0
    %v1104 = vadd.f32 %v1039, %v1103
    %v1105 = vpop.f32.mrb[0].mxu0
    %1106 = vdwg.mxu0
    %v1107 = vpack.c.bf16 %v1080, %v1077
    %v1108 = vpack.c.bf16 %v1088, %v1085
    %v1109 = vpack.c.bf16 %v1096, %v1093
    %v1110 = vpack.c.bf16 %v1104, %v1101
    %v1111 = vld [vmem:[#allocation6] sm:$0xff]
    %v1112 = vld [vmem:[#allocation6 + $0x8] sm:$0xff]
    %v1113 = vld [vmem:[#allocation6 + $0x10] sm:$0xff]
    %v1114 = vld [vmem:[#allocation6 + $0x18] sm:$0xff]
    %v1115 = vld [vmem:[#allocation6 + $0x20] sm:$0xff]
    %v1116 = vld [vmem:[#allocation6 + $0x28] sm:$0xff]
    %v1117 = vld [vmem:[#allocation6 + $0x30] sm:$0xff]
    %v1118 = vld [vmem:[#allocation6 + $0x38] sm:$0xff]
    %v1119 = vld [vmem:[#allocation6 + $0x40] sm:$0xff]
    %v1120 = vld [vmem:[#allocation6 + $0x48] sm:$0xff]
    %v1121 = vld [vmem:[#allocation6 + $0x50] sm:$0xff]
    %v1122 = vld [vmem:[#allocation6 + $0x58] sm:$0xff]
    %v1123 = vld [vmem:[#allocation6 + $0x60] sm:$0xff]
    %v1124 = vld [vmem:[#allocation6 + $0x68] sm:$0xff]
    %v1125 = vld [vmem:[#allocation6 + $0x70] sm:$0xff]
    %v1126 = vld [vmem:[#allocation6 + $0x78] sm:$0xff]
    %v1127 = vld [vmem:[#allocation6 + $0x80] sm:$0xff]
    %v1128 = vld [vmem:[#allocation6 + $0x88] sm:$0xff]
    %v1129 = vld [vmem:[#allocation6 + $0x90] sm:$0xff]
    %v1130 = vld [vmem:[#allocation6 + $0x98] sm:$0xff]
    %v1131 = vld [vmem:[#allocation6 + $0xa0] sm:$0xff]
    %v1132 = vld [vmem:[#allocation6 + $0xa8] sm:$0xff]
    %v1133 = vld [vmem:[#allocation6 + $0xb0] sm:$0xff]
    %v1134 = vld [vmem:[#allocation6 + $0xb8] sm:$0xff]
    %v1135 = vld [vmem:[#allocation6 + $0xc0] sm:$0xff]
    %v1136 = vld [vmem:[#allocation6 + $0xc8] sm:$0xff]
    %v1137 = vld [vmem:[#allocation6 + $0xd0] sm:$0xff]
    %v1138 = vld [vmem:[#allocation6 + $0xd8] sm:$0xff]
    %v1139 = vld [vmem:[#allocation6 + $0xe0] sm:$0xff]
    %v1140 = vld [vmem:[#allocation6 + $0xe8] sm:$0xff]
    %v1141 = vld [vmem:[#allocation6 + $0xf0] sm:$0xff]
    %v1142 = vld [vmem:[#allocation6 + $0xf8] sm:$0xff]
    %v1143 = vld [vmem:[%s4] sm:$0xf]
    %v1145 = vlaneseq
    %v1146 = vshrl.u32 %v1145, 7
    %v1147 = vsub.s32 0, %v1146
    %v1148 = vrot.slane %v1143, %v1147
    %v1149 = vlaneseq
    %v1150 = vshrl.u32 %v1149, 7
    %v1151 = vsub.s32 1, %v1150
    %v1152 = vrot.slane %v1143, %v1151
    %v1153 = vlaneseq
    %v1154 = vshrl.u32 %v1153, 7
    %v1155 = vsub.s32 2, %v1154
    %v1156 = vrot.slane %v1143, %v1155
    %v1157 = vlaneseq
    %v1158 = vshrl.u32 %v1157, 7
    %v1159 = vsub.s32 3, %v1158
    %v1160 = vrot.slane %v1143, %v1159
    %v1197 = vunpack.c.l.b16 %v1111
    %v1198 = vunpack.c.h.b16 %v1111
    %v1199 = vunpack.c.l.b16 %v1112
    %v1200 = vunpack.c.h.b16 %v1112
    %v1201 = vunpack.c.l.b16 %v1113
    %v1202 = vunpack.c.h.b16 %v1113
    %v1203 = vunpack.c.l.b16 %v1114
    %v1204 = vunpack.c.h.b16 %v1114
    %v1205 = vunpack.c.l.b16 %v1115
    %v1206 = vunpack.c.h.b16 %v1115
    %v1207 = vunpack.c.l.b16 %v1116
    %v1208 = vunpack.c.h.b16 %v1116
    %v1209 = vunpack.c.l.b16 %v1117
    %v1210 = vunpack.c.h.b16 %v1117
    %v1211 = vunpack.c.l.b16 %v1118
    %v1212 = vunpack.c.h.b16 %v1118
    %v1213 = vunpack.c.l.b16 %v1119
    %v1214 = vunpack.c.h.b16 %v1119
    %v1215 = vunpack.c.l.b16 %v1120
    %v1216 = vunpack.c.h.b16 %v1120
    %v1217 = vunpack.c.l.b16 %v1121
    %v1218 = vunpack.c.h.b16 %v1121
    %v1219 = vunpack.c.l.b16 %v1122
    %v1220 = vunpack.c.h.b16 %v1122
    %v1221 = vunpack.c.l.b16 %v1123
    %v1222 = vunpack.c.h.b16 %v1123
    %v1223 = vunpack.c.l.b16 %v1124
    %v1224 = vunpack.c.h.b16 %v1124
    %v1225 = vunpack.c.l.b16 %v1125
    %v1226 = vunpack.c.h.b16 %v1125
    %v1227 = vunpack.c.l.b16 %v1126
    %v1228 = vunpack.c.h.b16 %v1126
    %v1229 = vunpack.c.l.b16 %v1127
    %v1230 = vunpack.c.h.b16 %v1127
    %v1231 = vunpack.c.l.b16 %v1128
    %v1232 = vunpack.c.h.b16 %v1128
    %v1233 = vunpack.c.l.b16 %v1129
    %v1234 = vunpack.c.h.b16 %v1129
    %v1235 = vunpack.c.l.b16 %v1130
    %v1236 = vunpack.c.h.b16 %v1130
    %v1237 = vunpack.c.l.b16 %v1131
    %v1238 = vunpack.c.h.b16 %v1131
    %v1239 = vunpack.c.l.b16 %v1132
    %v1240 = vunpack.c.h.b16 %v1132
    %v1241 = vunpack.c.l.b16 %v1133
    %v1242 = vunpack.c.h.b16 %v1133
    %v1243 = vunpack.c.l.b16 %v1134
    %v1244 = vunpack.c.h.b16 %v1134
    %v1245 = vunpack.c.l.b16 %v1135
    %v1246 = vunpack.c.h.b16 %v1135
    %v1247 = vunpack.c.l.b16 %v1136
    %v1248 = vunpack.c.h.b16 %v1136
    %v1249 = vunpack.c.l.b16 %v1137
    %v1250 = vunpack.c.h.b16 %v1137
    %v1251 = vunpack.c.l.b16 %v1138
    %v1252 = vunpack.c.h.b16 %v1138
    %v1253 = vunpack.c.l.b16 %v1139
    %v1254 = vunpack.c.h.b16 %v1139
    %v1255 = vunpack.c.l.b16 %v1140
    %v1256 = vunpack.c.h.b16 %v1140
    %v1257 = vunpack.c.l.b16 %v1141
    %v1258 = vunpack.c.h.b16 %v1141
    %v1259 = vunpack.c.l.b16 %v1142
    %v1260 = vunpack.c.h.b16 %v1142
    %v1261 = vpack.c.b16 %v1201, %v1197
    %v1262 = vpack.c.b16 %v1202, %v1198
    %v1263 = vpack.c.b16 %v1203, %v1199
    %v1264 = vpack.c.b16 %v1204, %v1200
    %v1265 = vpack.c.b16 %v1209, %v1205
    %v1266 = vpack.c.b16 %v1210, %v1206
    %v1267 = vpack.c.b16 %v1211, %v1207
    %v1268 = vpack.c.b16 %v1212, %v1208
    %v1269 = vpack.c.b16 %v1217, %v1213
    %v1270 = vpack.c.b16 %v1218, %v1214
    %v1271 = vpack.c.b16 %v1219, %v1215
    %v1272 = vpack.c.b16 %v1220, %v1216
    %v1273 = vpack.c.b16 %v1225, %v1221
    %v1274 = vpack.c.b16 %v1226, %v1222
    %v1275 = vpack.c.b16 %v1227, %v1223
    %v1276 = vpack.c.b16 %v1228, %v1224
    %v1277 = vpack.c.b16 %v1233, %v1229
    %v1278 = vpack.c.b16 %v1234, %v1230
    %v1279 = vpack.c.b16 %v1235, %v1231
    %v1280 = vpack.c.b16 %v1236, %v1232
    %v1281 = vpack.c.b16 %v1241, %v1237
    %v1282 = vpack.c.b16 %v1242, %v1238
    %v1283 = vpack.c.b16 %v1243, %v1239
    %v1284 = vpack.c.b16 %v1244, %v1240
    %v1285 = vpack.c.b16 %v1249, %v1245
    %v1286 = vpack.c.b16 %v1250, %v1246
    %v1287 = vpack.c.b16 %v1251, %v1247
    %v1288 = vpack.c.b16 %v1252, %v1248
    %v1289 = vpack.c.b16 %v1257, %v1253
    %v1290 = vpack.c.b16 %v1258, %v1254
    %v1291 = vpack.c.b16 %v1259, %v1255
    %v1292 = vpack.c.b16 %v1260, %v1256
    %1325 = vmatprep.subr.bf16.mxu0 %v1262
    %1326 = vmatpush1.bf16.msra.mxu0 %v1261
    %1327 = vmatprep.subr.bf16.mxu0 %v1266
    %1328 = vmatpush1.bf16.msra.mxu0 %v1265
    %1329 = vmatprep.subr.bf16.mxu0 %v1270
    %1330 = vmatpush1.bf16.msra.mxu0 %v1269
    %1331 = vmatprep.subr.bf16.mxu0 %v1274
    %1332 = vmatpush1.bf16.msra.mxu0 %v1273
    %1333 = vmatprep.subr.bf16.mxu0 %v1278
    %1334 = vmatpush1.bf16.msra.mxu0 %v1277
    %1335 = vmatprep.subr.bf16.mxu0 %v1282
    %1336 = vmatpush1.bf16.msra.mxu0 %v1281
    %1337 = vmatprep.subr.bf16.mxu0 %v1286
    %1338 = vmatpush1.bf16.msra.mxu0 %v1285
    %1339 = vmatprep.subr.bf16.mxu0 %v1290
    %1340 = vmatpush1.bf16.msra.mxu0 %v1289
    %1341 = vmatprep.subr.bf16.mxu0 0
    %1342 = vmatpush1.bf16.msra.mxu0 0
    %1343 = vmatprep.subr.bf16.mxu0 0
    %1344 = vmatpush1.bf16.msra.mxu0 0
    %1345 = vmatprep.subr.bf16.mxu0 0
    %1346 = vmatpush1.bf16.msra.mxu0 0
    %1347 = vmatprep.subr.bf16.mxu0 0
    %1348 = vmatpush1.bf16.msra.mxu0 0
    %1349 = vmatprep.subr.bf16.mxu0 0
    %1350 = vmatpush1.bf16.msra.mxu0 0
    %1351 = vmatprep.subr.bf16.mxu0 0
    %1352 = vmatpush1.bf16.msra.mxu0 0
    %1353 = vmatprep.subr.bf16.mxu0 0
    %1354 = vmatpush1.bf16.msra.mxu0 0
    %1355 = vmatprep.subr.bf16.mxu0 0
    %1356 = vmatpush1.bf16.msra.mxu0 0
    %1357 = vmatprep.mubr.bf16.mxu0 0
    %1358 = vmatmul.mubr.bf16.gmra.mrb[0].mxu0 %v1107
    %v1359 = vpop.f32.mrb[0].mxu0
    %v1360 = vadd.f32 %v1148, %v1359
    %v1361 = vpop.f32.mrb[0].mxu0
    %v1362 = vadd.f32 %v1152, %v1361
    %v1363 = vpop.f32.mrb[0].mxu0
    %v1364 = vadd.f32 %v1148, %v1363
    %v1365 = vpop.f32.mrb[0].mxu0
    %v1366 = vadd.f32 %v1152, %v1365
    %1367 = vmatprep.mubr.bf16.mxu0 0
    %1368 = vmatmul.mubr.bf16.gmra.mrb[0].mxu0 %v1108
    %v1369 = vpop.f32.mrb[0].mxu0
    %v1370 = vadd.f32 %v1148, %v1369
    %v1371 = vpop.f32.mrb[0].mxu0
    %v1372 = vadd.f32 %v1152, %v1371
    %v1373 = vpop.f32.mrb[0].mxu0
    %v1374 = vadd.f32 %v1148, %v1373
    %v1375 = vpop.f32.mrb[0].mxu0
    %v1376 = vadd.f32 %v1152, %v1375
    %1377 = vmatprep.mubr.bf16.mxu0 0
    %1378 = vmatmul.mubr.bf16.gmra.mrb[0].mxu0 %v1109
    %v1379 = vpop.f32.mrb[0].mxu0
    %v1380 = vadd.f32 %v1148, %v1379
    %v1381 = vpop.f32.mrb[0].mxu0
    %v1382 = vadd.f32 %v1152, %v1381
    %v1383 = vpop.f32.mrb[0].mxu0
    %v1384 = vadd.f32 %v1148, %v1383
    %v1385 = vpop.f32.mrb[0].mxu0
    %v1386 = vadd.f32 %v1152, %v1385
    %1387 = vmatprep.mubr.bf16.mxu0 0
    %1388 = vmatmul.mubr.bf16.gmra.mrb[0].mxu0 %v1110
    %v1389 = vpop.f32.mrb[0].mxu0
    %v1390 = vadd.f32 %v1148, %v1389
    %v1391 = vpop.f32.mrb[0].mxu0
    %v1392 = vadd.f32 %v1152, %v1391
    %v1393 = vpop.f32.mrb[0].mxu0
    %v1394 = vadd.f32 %v1148, %v1393
    %v1395 = vpop.f32.mrb[0].mxu0
    %v1396 = vadd.f32 %v1152, %v1395
    %1397 = vdwg.mxu0
    %1398 = vmatprep.subr.bf16.mxu0 %v1264
    %1399 = vmatpush1.bf16.msra.mxu0 %v1263
    %1400 = vmatprep.subr.bf16.mxu0 %v1268
    %1401 = vmatpush1.bf16.msra.mxu0 %v1267
    %1402 = vmatprep.subr.bf16.mxu0 %v1272
    %1403 = vmatpush1.bf16.msra.mxu0 %v1271
    %1404 = vmatprep.subr.bf16.mxu0 %v1276
    %1405 = vmatpush1.bf16.msra.mxu0 %v1275
    %1406 = vmatprep.subr.bf16.mxu0 %v1280
    %1407 = vmatpush1.bf16.msra.mxu0 %v1279
    %1408 = vmatprep.subr.bf16.mxu0 %v1284
    %1409 = vmatpush1.bf16.msra.mxu0 %v1283
    %1410 = vmatprep.subr.bf16.mxu0 %v1288
    %1411 = vmatpush1.bf16.msra.mxu0 %v1287
    %1412 = vmatprep.subr.bf16.mxu0 %v1292
    %1413 = vmatpush1.bf16.msra.mxu0 %v1291
    %1414 = vmatprep.subr.bf16.mxu0 0
    %1415 = vmatpush1.bf16.msra.mxu0 0
    %1416 = vmatprep.subr.bf16.mxu0 0
    %1417 = vmatpush1.bf16.msra.mxu0 0
    %1418 = vmatprep.subr.bf16.mxu0 0
    %1419 = vmatpush1.bf16.msra.mxu0 0
    %1420 = vmatprep.subr.bf16.mxu0 0
    %1421 = vmatpush1.bf16.msra.mxu0 0
    %1422 = vmatprep.subr.bf16.mxu0 0
    %1423 = vmatpush1.bf16.msra.mxu0 0
    %1424 = vmatprep.subr.bf16.mxu0 0
    %1425 = vmatpush1.bf16.msra.mxu0 0
    %1426 = vmatprep.subr.bf16.mxu0 0
    %1427 = vmatpush1.bf16.msra.mxu0 0
    %1428 = vmatprep.subr.bf16.mxu0 0
    %1429 = vmatpush1.bf16.msra.mxu0 0
    %1430 = vmatprep.mubr.bf16.mxu0 0
    %1431 = vmatmul.mubr.bf16.gmra.mrb[0].mxu0 %v1107
    %v1432 = vpop.f32.mrb[0].mxu0
    %v1433 = vadd.f32 %v1156, %v1432
    %v1434 = vpop.f32.mrb[0].mxu0
    %v1435 = vadd.f32 %v1160, %v1434
    %v1436 = vpop.f32.mrb[0].mxu0
    %v1437 = vadd.f32 %v1156, %v1436
    %v1438 = vpop.f32.mrb[0].mxu0
    %v1439 = vadd.f32 %v1160, %v1438
    %1440 = vmatprep.mubr.bf16.mxu0 0
    %1441 = vmatmul.mubr.bf16.gmra.mrb[0].mxu0 %v1108
    %v1442 = vpop.f32.mrb[0].mxu0
    %v1443 = vadd.f32 %v1156, %v1442
    %v1444 = vpop.f32.mrb[0].mxu0
    %v1445 = vadd.f32 %v1160, %v1444
    %v1446 = vpop.f32.mrb[0].mxu0
    %v1447 = vadd.f32 %v1156, %v1446
    %v1448 = vpop.f32.mrb[0].mxu0
    %v1449 = vadd.f32 %v1160, %v1448
    %1450 = vmatprep.mubr.bf16.mxu0 0
    %1451 = vmatmul.mubr.bf16.gmra.mrb[0].mxu0 %v1109
    %v1452 = vpop.f32.mrb[0].mxu0
    %v1453 = vadd.f32 %v1156, %v1452
    %v1454 = vpop.f32.mrb[0].mxu0
    %v1455 = vadd.f32 %v1160, %v1454
    %v1456 = vpop.f32.mrb[0].mxu0
    %v1457 = vadd.f32 %v1156, %v1456
    %v1458 = vpop.f32.mrb[0].mxu0
    %v1459 = vadd.f32 %v1160, %v1458
    %1460 = vmatprep.mubr.bf16.mxu0 0
    %1461 = vmatmul.mubr.bf16.gmra.mrb[0].mxu0 %v1110
    %v1462 = vpop.f32.mrb[0].mxu0
    %v1463 = vadd.f32 %v1156, %v1462
    %v1464 = vpop.f32.mrb[0].mxu0
    %v1465 = vadd.f32 %v1160, %v1464
    %v1466 = vpop.f32.mrb[0].mxu0
    %v1467 = vadd.f32 %v1156, %v1466
    %v1468 = vpop.f32.mrb[0].mxu0
    %v1469 = vadd.f32 %v1160, %v1468
    %1470 = vdwg.mxu0
    %1471 = vst [vmem:[#allocation2] sm:$0xff] %v1360
    %1472 = vst [vmem:[#allocation2 + $0x8] sm:$0xff] %v1362
    %1473 = vst [vmem:[#allocation2 + $0x10] sm:$0xff] %v1433
    %1474 = vst [vmem:[#allocation2 + $0x18] sm:$0xff] %v1435
    %1475 = vst [vmem:[#allocation2 + $0x20] sm:$0xff] %v1364
    %1476 = vst [vmem:[#allocation2 + $0x28] sm:$0xff] %v1366
    %1477 = vst [vmem:[#allocation2 + $0x30] sm:$0xff] %v1437
    %1478 = vst [vmem:[#allocation2 + $0x38] sm:$0xff] %v1439
    %1479 = vst [vmem:[#allocation2 + $0x40] sm:$0xff] %v1370
    %1480 = vst [vmem:[#allocation2 + $0x48] sm:$0xff] %v1372
    %1481 = vst [vmem:[#allocation2 + $0x50] sm:$0xff] %v1443
    %1482 = vst [vmem:[#allocation2 + $0x58] sm:$0xff] %v1445
    %1483 = vst [vmem:[#allocation2 + $0x60] sm:$0xff] %v1374
    %1484 = vst [vmem:[#allocation2 + $0x68] sm:$0xff] %v1376
    %1485 = vst [vmem:[#allocation2 + $0x70] sm:$0xff] %v1447
    %1486 = vst [vmem:[#allocation2 + $0x78] sm:$0xff] %v1449
    %1487 = vst [vmem:[#allocation2 + $0x80] sm:$0xff] %v1380
    %1488 = vst [vmem:[#allocation2 + $0x88] sm:$0xff] %v1382
    %1489 = vst [vmem:[#allocation2 + $0x90] sm:$0xff] %v1453
    %1490 = vst [vmem:[#allocation2 + $0x98] sm:$0xff] %v1455
    %1491 = vst [vmem:[#allocation2 + $0xa0] sm:$0xff] %v1384
    %1492 = vst [vmem:[#allocation2 + $0xa8] sm:$0xff] %v1386
    %1493 = vst [vmem:[#allocation2 + $0xb0] sm:$0xff] %v1457
    %1494 = vst [vmem:[#allocation2 + $0xb8] sm:$0xff] %v1459
    %1495 = vst [vmem:[#allocation2 + $0xc0] sm:$0xff] %v1390
    %1496 = vst [vmem:[#allocation2 + $0xc8] sm:$0xff] %v1392
    %1497 = vst [vmem:[#allocation2 + $0xd0] sm:$0xff] %v1463
    %1498 = vst [vmem:[#allocation2 + $0xd8] sm:$0xff] %v1465
    %1499 = vst [vmem:[#allocation2 + $0xe0] sm:$0xff] %v1394
    %1500 = vst [vmem:[#allocation2 + $0xe8] sm:$0xff] %v1396
    %1501 = vst [vmem:[#allocation2 + $0xf0] sm:$0xff] %v1467
    %1502 = vst [vmem:[#allocation2 + $0xf8] sm:$0xff] %v1469
    %v1503 = vld [vmem:[#allocation8] sm:$0xff]
    %v1504 = vld [vmem:[#allocation8 + $0x8] sm:$0xff]
    %v1505 = vld [vmem:[#allocation8 + $0x10] sm:$0xff]
    %v1506 = vld [vmem:[#allocation8 + $0x18] sm:$0xff]
    %v1507 = vld [vmem:[#allocation8 + $0x20] sm:$0xff]
    %v1508 = vld [vmem:[#allocation8 + $0x28] sm:$0xff]
    %v1509 = vld [vmem:[#allocation8 + $0x30] sm:$0xff]
    %v1510 = vld [vmem:[#allocation8 + $0x38] sm:$0xff]
    %v1511 = vld [vmem:[#allocation8 + $0x40] sm:$0xff]
    %v1512 = vld [vmem:[#allocation8 + $0x48] sm:$0xff]
    %v1513 = vld [vmem:[#allocation8 + $0x50] sm:$0xff]
    %v1514 = vld [vmem:[#allocation8 + $0x58] sm:$0xff]
    %v1515 = vld [vmem:[#allocation8 + $0x60] sm:$0xff]
    %v1516 = vld [vmem:[#allocation8 + $0x68] sm:$0xff]
    %v1517 = vld [vmem:[#allocation8 + $0x70] sm:$0xff]
    %v1518 = vld [vmem:[#allocation8 + $0x78] sm:$0xff]
    %v1519 = vld [vmem:[#allocation8 + $0x80] sm:$0xff]
    %v1520 = vld [vmem:[#allocation8 + $0x88] sm:$0xff]
    %v1521 = vld [vmem:[#allocation8 + $0x90] sm:$0xff]
    %v1522 = vld [vmem:[#allocation8 + $0x98] sm:$0xff]
    %v1523 = vld [vmem:[#allocation8 + $0xa0] sm:$0xff]
    %v1524 = vld [vmem:[#allocation8 + $0xa8] sm:$0xff]
    %v1525 = vld [vmem:[#allocation8 + $0xb0] sm:$0xff]
    %v1526 = vld [vmem:[#allocation8 + $0xb8] sm:$0xff]
    %v1527 = vld [vmem:[#allocation8 + $0xc0] sm:$0xff]
    %v1528 = vld [vmem:[#allocation8 + $0xc8] sm:$0xff]
    %v1529 = vld [vmem:[#allocation8 + $0xd0] sm:$0xff]
    %v1530 = vld [vmem:[#allocation8 + $0xd8] sm:$0xff]
    %v1531 = vld [vmem:[#allocation8 + $0xe0] sm:$0xff]
    %v1532 = vld [vmem:[#allocation8 + $0xe8] sm:$0xff]
    %v1533 = vld [vmem:[#allocation8 + $0xf0] sm:$0xff]
    %v1534 = vld [vmem:[#allocation8 + $0xf8] sm:$0xff]
    %s1535 = smul.u32 0, 4
    %s1536 = smul.addr %s1535, 8
    %s1537 = scalar_lea.vmem [#allocation2], %s1536
    %v1538 = vld [vmem:[%s1537] sm:$0xff]
    %v1539 = vld [vmem:[%s1537 + $0x8] sm:$0xff]
    %v1540 = vld [vmem:[%s1537 + $0x10] sm:$0xff]
    %v1541 = vld [vmem:[%s1537 + $0x18] sm:$0xff]
    %v1574 = vunpack.c.l.b16 %v1503
    %v1575 = vunpack.c.h.b16 %v1503
    %v1576 = vunpack.c.l.b16 %v1504
    %v1577 = vunpack.c.h.b16 %v1504
    %v1578 = vunpack.c.l.b16 %v1505
    %v1579 = vunpack.c.h.b16 %v1505
    %v1580 = vunpack.c.l.b16 %v1506
    %v1581 = vunpack.c.h.b16 %v1506
    %v1582 = vunpack.c.l.b16 %v1507
    %v1583 = vunpack.c.h.b16 %v1507
    %v1584 = vunpack.c.l.b16 %v1508
    %v1585 = vunpack.c.h.b16 %v1508
    %v1586 = vunpack.c.l.b16 %v1509
    %v1587 = vunpack.c.h.b16 %v1509
    %v1588 = vunpack.c.l.b16 %v1510
    %v1589 = vunpack.c.h.b16 %v1510
    %v1590 = vunpack.c.l.b16 %v1511
    %v1591 = vunpack.c.h.b16 %v1511
    %v1592 = vunpack.c.l.b16 %v1512
    %v1593 = vunpack.c.h.b16 %v1512
    %v1594 = vunpack.c.l.b16 %v1513
    %v1595 = vunpack.c.h.b16 %v1513
    %v1596 = vunpack.c.l.b16 %v1514
    %v1597 = vunpack.c.h.b16 %v1514
    %v1598 = vunpack.c.l.b16 %v1515
    %v1599 = vunpack.c.h.b16 %v1515
    %v1600 = vunpack.c.l.b16 %v1516
    %v1601 = vunpack.c.h.b16 %v1516
    %v1602 = vunpack.c.l.b16 %v1517
    %v1603 = vunpack.c.h.b16 %v1517
    %v1604 = vunpack.c.l.b16 %v1518
    %v1605 = vunpack.c.h.b16 %v1518
    %v1606 = vunpack.c.l.b16 %v1519
    %v1607 = vunpack.c.h.b16 %v1519
    %v1608 = vunpack.c.l.b16 %v1520
    %v1609 = vunpack.c.h.b16 %v1520
    %v1610 = vunpack.c.l.b16 %v1521
    %v1611 = vunpack.c.h.b16 %v1521
    %v1612 = vunpack.c.l.b16 %v1522
    %v1613 = vunpack.c.h.b16 %v1522
    %v1614 = vunpack.c.l.b16 %v1523
    %v1615 = vunpack.c.h.b16 %v1523
    %v1616 = vunpack.c.l.b16 %v1524
    %v1617 = vunpack.c.h.b16 %v1524
    %v1618 = vunpack.c.l.b16 %v1525
    %v1619 = vunpack.c.h.b16 %v1525
    %v1620 = vunpack.c.l.b16 %v1526
    %v1621 = vunpack.c.h.b16 %v1526
    %v1622 = vunpack.c.l.b16 %v1527
    %v1623 = vunpack.c.h.b16 %v1527
    %v1624 = vunpack.c.l.b16 %v1528
    %v1625 = vunpack.c.h.b16 %v1528
    %v1626 = vunpack.c.l.b16 %v1529
    %v1627 = vunpack.c.h.b16 %v1529
    %v1628 = vunpack.c.l.b16 %v1530
    %v1629 = vunpack.c.h.b16 %v1530
    %v1630 = vunpack.c.l.b16 %v1531
    %v1631 = vunpack.c.h.b16 %v1531
    %v1632 = vunpack.c.l.b16 %v1532
    %v1633 = vunpack.c.h.b16 %v1532
    %v1634 = vunpack.c.l.b16 %v1533
    %v1635 = vunpack.c.h.b16 %v1533
    %v1636 = vunpack.c.l.b16 %v1534
    %v1637 = vunpack.c.h.b16 %v1534
    %v1638 = vpack.c.b16 %v1578, %v1574
    %v1639 = vpack.c.b16 %v1579, %v1575
    %v1640 = vpack.c.b16 %v1580, %v1576
    %v1641 = vpack.c.b16 %v1581, %v1577
    %v1642 = vpack.c.b16 %v1586, %v1582
    %v1643 = vpack.c.b16 %v1587, %v1583
    %v1644 = vpack.c.b16 %v1588, %v1584
    %v1645 = vpack.c.b16 %v1589, %v1585
    %v1646 = vpack.c.b16 %v1594, %v1590
    %v1647 = vpack.c.b16 %v1595, %v1591
    %v1648 = vpack.c.b16 %v1596, %v1592
    %v1649 = vpack.c.b16 %v1597, %v1593
    %v1650 = vpack.c.b16 %v1602, %v1598
    %v1651 = vpack.c.b16 %v1603, %v1599
    %v1652 = vpack.c.b16 %v1604, %v1600
    %v1653 = vpack.c.b16 %v1605, %v1601
    %v1654 = vpack.c.b16 %v1610, %v1606
    %v1655 = vpack.c.b16 %v1611, %v1607
    %v1656 = vpack.c.b16 %v1612, %v1608
    %v1657 = vpack.c.b16 %v1613, %v1609
    %v1658 = vpack.c.b16 %v1618, %v1614
    %v1659 = vpack.c.b16 %v1619, %v1615
    %v1660 = vpack.c.b16 %v1620, %v1616
    %v1661 = vpack.c.b16 %v1621, %v1617
    %v1662 = vpack.c.b16 %v1626, %v1622
    %v1663 = vpack.c.b16 %v1627, %v1623
    %v1664 = vpack.c.b16 %v1628, %v1624
    %v1665 = vpack.c.b16 %v1629, %v1625
    %v1666 = vpack.c.b16 %v1634, %v1630
    %v1667 = vpack.c.b16 %v1635, %v1631
    %v1668 = vpack.c.b16 %v1636, %v1632
    %v1669 = vpack.c.b16 %v1637, %v1633
    %1702 = vmatprep.subr.bf16.mxu0 %v1639
    %1703 = vmatpush1.bf16.msra.mxu0 %v1638
    %1704 = vmatprep.subr.bf16.mxu0 %v1643
    %1705 = vmatpush1.bf16.msra.mxu0 %v1642
    %1706 = vmatprep.subr.bf16.mxu0 %v1647
    %1707 = vmatpush1.bf16.msra.mxu0 %v1646
    %1708 = vmatprep.subr.bf16.mxu0 %v1651
    %1709 = vmatpush1.bf16.msra.mxu0 %v1650
    %1710 = vmatprep.subr.bf16.mxu0 %v1655
    %1711 = vmatpush1.bf16.msra.mxu0 %v1654
    %1712 = vmatprep.subr.bf16.mxu0 %v1659
    %1713 = vmatpush1.bf16.msra.mxu0 %v1658
    %1714 = vmatprep.subr.bf16.mxu0 %v1663
    %1715 = vmatpush1.bf16.msra.mxu0 %v1662
    %1716 = vmatprep.subr.bf16.mxu0 %v1667
    %1717 = vmatpush1.bf16.msra.mxu0 %v1666
    %1718 = vmatprep.subr.bf16.mxu0 0
    %1719 = vmatpush1.bf16.msra.mxu0 0
    %1720 = vmatprep.subr.bf16.mxu0 0
    %1721 = vmatpush1.bf16.msra.mxu0 0
    %1722 = vmatprep.subr.bf16.mxu0 0
    %1723 = vmatpush1.bf16.msra.mxu0 0
    %1724 = vmatprep.subr.bf16.mxu0 0
    %1725 = vmatpush1.bf16.msra.mxu0 0
    %1726 = vmatprep.subr.bf16.mxu0 0
    %1727 = vmatpush1.bf16.msra.mxu0 0
    %1728 = vmatprep.subr.bf16.mxu0 0
    %1729 = vmatpush1.bf16.msra.mxu0 0
    %1730 = vmatprep.subr.bf16.mxu0 0
    %1731 = vmatpush1.bf16.msra.mxu0 0
    %1732 = vmatprep.subr.bf16.mxu0 0
    %1733 = vmatpush1.bf16.msra.mxu0 0
    %1734 = vmatprep.mubr.bf16.mxu0 0
    %1735 = vmatmul.mubr.bf16.gmra.mrb[0].mxu0 0
    %v1736 = vpop.f32.mrb[0].mxu0
    %v1737 = vadd.f32 0.0, %v1736
    %v1738 = vpop.f32.mrb[0].mxu0
    %v1739 = vadd.f32 0.0, %v1738
    %v1740 = vpop.f32.mrb[0].mxu0
    %v1741 = vpop.f32.mrb[0].mxu0
    %1742 = vdwg.mxu0
    %1743 = vmatprep.subr.bf16.mxu0 %v1641
    %1744 = vmatpush1.bf16.msra.mxu0 %v1640
    %1745 = vmatprep.subr.bf16.mxu0 %v1645
    %1746 = vmatpush1.bf16.msra.mxu0 %v1644
    %1747 = vmatprep.subr.bf16.mxu0 %v1649
    %1748 = vmatpush1.bf16.msra.mxu0 %v1648
    %1749 = vmatprep.subr.bf16.mxu0 %v1653
    %1750 = vmatpush1.bf16.msra.mxu0 %v1652
    %1751 = vmatprep.subr.bf16.mxu0 %v1657
    %1752 = vmatpush1.bf16.msra.mxu0 %v1656
    %1753 = vmatprep.subr.bf16.mxu0 %v1661
    %1754 = vmatpush1.bf16.msra.mxu0 %v1660
    %1755 = vmatprep.subr.bf16.mxu0 %v1665
    %1756 = vmatpush1.bf16.msra.mxu0 %v1664
    %1757 = vmatprep.subr.bf16.mxu0 %v1669
    %1758 = vmatpush1.bf16.msra.mxu0 %v1668
    %1759 = vmatprep.subr.bf16.mxu0 0
    %1760 = vmatpush1.bf16.msra.mxu0 0
    %1761 = vmatprep.subr.bf16.mxu0 0
    %1762 = vmatpush1.bf16.msra.mxu0 0
    %1763 = vmatprep.subr.bf16.mxu0 0
    %1764 = vmatpush1.bf16.msra.mxu0 0
    %1765 = vmatprep.subr.bf16.mxu0 0
    %1766 = vmatpush1.bf16.msra.mxu0 0
    %1767 = vmatprep.subr.bf16.mxu0 0
    %1768 = vmatpush1.bf16.msra.mxu0 0
    %1769 = vmatprep.subr.bf16.mxu0 0
    %1770 = vmatpush1.bf16.msra.mxu0 0
    %1771 = vmatprep.subr.bf16.mxu0 0
    %1772 = vmatpush1.bf16.msra.mxu0 0
    %1773 = vmatprep.subr.bf16.mxu0 0
    %1774 = vmatpush1.bf16.msra.mxu0 0
    %1775 = vmatprep.mubr.bf16.mxu0 0
    %1776 = vmatmul.mubr.bf16.gmra.mrb[0].mxu0 0
    %v1777 = vpop.f32.mrb[0].mxu0
    %v1778 = vadd.f32 0.0, %v1777
    %v1779 = vpop.f32.mrb[0].mxu0
    %v1780 = vadd.f32 0.0, %v1779
    %v1781 = vpop.f32.mrb[0].mxu0
    %v1782 = vpop.f32.mrb[0].mxu0
    %1783 = vdwg.mxu0
    %v1784 = vadd.f32 %v1538, %v1737
    %v1785 = vadd.f32 %v1539, %v1739
    %v1786 = vadd.f32 %v1540, %v1778
    %v1787 = vadd.f32 %v1541, %v1780
    %v1788 = vxor.u32 %v1784, 2147483648
    %v1789 = vmul.f32 %v1788, 1.442695
    %v1790 = vpow.pop %v1789
    %v1791 = vadd.f32 %v1790, 1.0
    %v1792 = vrcp.pop %v1791
    %v1793 = vmul.f32 1.0, %v1792
    %v1794 = vxor.u32 %v1785, 2147483648
    %v1795 = vmul.f32 %v1794, 1.442695
    %v1796 = vpow.pop %v1795
    %v1797 = vadd.f32 %v1796, 1.0
    %v1798 = vrcp.pop %v1797
    %v1799 = vmul.f32 1.0, %v1798
    %v1800 = vtanh.pop %v1786
    %v1801 = vxor.u32 %v1787, 2147483648
    %v1802 = vmul.f32 %v1801, 1.442695
    %v1803 = vpow.pop %v1802
    %v1804 = vadd.f32 %v1803, 1.0
    %v1805 = vrcp.pop %v1804
    %v1806 = vmul.f32 1.0, %v1805
    %v1807 = vmul.f32 %v1799, 0.0
    %v1808 = vmul.f32 %v1793, %v1800
    %v1809 = vadd.f32 %v1807, %v1808
    %v1810 = vtanh.pop %v1809
    %v1811 = vmul.f32 %v1806, %v1810
    %s1812 = smul.u32 1, 4
    %s1813 = smul.addr %s1812, 8
    %s1814 = scalar_lea.vmem [#allocation2], %s1813
    %v1815 = vld [vmem:[%s1814] sm:$0xff]
    %v1816 = vld [vmem:[%s1814 + $0x8] sm:$0xff]
    %v1817 = vld [vmem:[%s1814 + $0x10] sm:$0xff]
    %v1818 = vld [vmem:[%s1814 + $0x18] sm:$0xff]
    %v1819 = vpack.c.bf16 %v1811, %v1811
    %1820 = vmatprep.subr.bf16.mxu0 %v1639
    %1821 = vmatpush1.bf16.msra.mxu0 %v1638
    %1822 = vmatprep.subr.bf16.mxu0 %v1643
    %1823 = vmatpush1.bf16.msra.mxu0 %v1642
    %1824 = vmatprep.subr.bf16.mxu0 %v1647
    %1825 = vmatpush1.bf16.msra.mxu0 %v1646
    %1826 = vmatprep.subr.bf16.mxu0 %v1651
    %1827 = vmatpush1.bf16.msra.mxu0 %v1650
    %1828 = vmatprep.subr.bf16.mxu0 %v1655
    %1829 = vmatpush1.bf16.msra.mxu0 %v1654
    %1830 = vmatprep.subr.bf16.mxu0 %v1659
    %1831 = vmatpush1.bf16.msra.mxu0 %v1658
    %1832 = vmatprep.subr.bf16.mxu0 %v1663
    %1833 = vmatpush1.bf16.msra.mxu0 %v1662
    %1834 = vmatprep.subr.bf16.mxu0 %v1667
    %1835 = vmatpush1.bf16.msra.mxu0 %v1666
    %1836 = vmatprep.subr.bf16.mxu0 0
    %1837 = vmatpush1.bf16.msra.mxu0 0
    %1838 = vmatprep.subr.bf16.mxu0 0
    %1839 = vmatpush1.bf16.msra.mxu0 0
    %1840 = vmatprep.subr.bf16.mxu0 0
    %1841 = vmatpush1.bf16.msra.mxu0 0
    %1842 = vmatprep.subr.bf16.mxu0 0
    %1843 = vmatpush1.bf16.msra.mxu0 0
    %1844 = vmatprep.subr.bf16.mxu0 0
    %1845 = vmatpush1.bf16.msra.mxu0 0
    %1846 = vmatprep.subr.bf16.mxu0 0
    %1847 = vmatpush1.bf16.msra.mxu0 0
    %1848 = vmatprep.subr.bf16.mxu0 0
    %1849 = vmatpush1.bf16.msra.mxu0 0
    %1850 = vmatprep.subr.bf16.mxu0 0
    %1851 = vmatpush1.bf16.msra.mxu0 0
    %1852 = vmatprep.mubr.bf16.mxu0 0
    %1853 = vmatmul.mubr.bf16.gmra.mrb[0].mxu0 %v1819
    %v1854 = vpop.f32.mrb[0].mxu0
    %v1855 = vadd.f32 0.0, %v1854
    %v1856 = vpop.f32.mrb[0].mxu0
    %v1857 = vadd.f32 0.0, %v1856
    %v1858 = vpop.f32.mrb[0].mxu0
    %v1859 = vpop.f32.mrb[0].mxu0
    %1860 = vdwg.mxu0
    %1861 = vmatprep.subr.bf16.mxu0 %v1641
    %1862 = vmatpush1.bf16.msra.mxu0 %v1640
    %1863 = vmatprep.subr.bf16.mxu0 %v1645
    %1864 = vmatpush1.bf16.msra.mxu0 %v1644
    %1865 = vmatprep.subr.bf16.mxu0 %v1649
    %1866 = vmatpush1.bf16.msra.mxu0 %v1648
    %1867 = vmatprep.subr.bf16.mxu0 %v1653
    %1868 = vmatpush1.bf16.msra.mxu0 %v1652
    %1869 = vmatprep.subr.bf16.mxu0 %v1657
    %1870 = vmatpush1.bf16.msra.mxu0 %v1656
    %1871 = vmatprep.subr.bf16.mxu0 %v1661
    %1872 = vmatpush1.bf16.msra.mxu0 %v1660
    %1873 = vmatprep.subr.bf16.mxu0 %v1665
    %1874 = vmatpush1.bf16.msra.mxu0 %v1664
    %1875 = vmatprep.subr.bf16.mxu0 %v1669
    %1876 = vmatpush1.bf16.msra.mxu0 %v1668
    %1877 = vmatprep.subr.bf16.mxu0 0
    %1878 = vmatpush1.bf16.msra.mxu0 0
    %1879 = vmatprep.subr.bf16.mxu0 0
    %1880 = vmatpush1.bf16.msra.mxu0 0
    %1881 = vmatprep.subr.bf16.mxu0 0
    %1882 = vmatpush1.bf16.msra.mxu0 0
    %1883 = vmatprep.subr.bf16.mxu0 0
    %1884 = vmatpush1.bf16.msra.mxu0 0
    %1885 = vmatprep.subr.bf16.mxu0 0
    %1886 = vmatpush1.bf16.msra.mxu0 0
    %1887 = vmatprep.subr.bf16.mxu0 0
    %1888 = vmatpush1.bf16.msra.mxu0 0
    %1889 = vmatprep.subr.bf16.mxu0 0
    %1890 = vmatpush1.bf16.msra.mxu0 0
    %1891 = vmatprep.subr.bf16.mxu0 0
    %1892 = vmatpush1.bf16.msra.mxu0 0
    %1893 = vmatprep.mubr.bf16.mxu0 0
    %1894 = vmatmul.mubr.bf16.gmra.mrb[0].mxu0 %v1819
    %v1895 = vpop.f32.mrb[0].mxu0
    %v1896 = vadd.f32 0.0, %v1895
    %v1897 = vpop.f32.mrb[0].mxu0
    %v1898 = vadd.f32 0.0, %v1897
    %v1899 = vpop.f32.mrb[0].mxu0
    %v1900 = vpop.f32.mrb[0].mxu0
    %1901 = vdwg.mxu0
    %v1902 = vadd.f32 %v1815, %v1855
    %v1903 = vadd.f32 %v1816, %v1857
    %v1904 = vadd.f32 %v1817, %v1896
    %v1905 = vadd.f32 %v1818, %v1898
    %v1906 = vxor.u32 %v1902, 2147483648
    %v1907 = vmul.f32 %v1906, 1.442695
    %v1908 = vpow.pop %v1907
    %v1909 = vadd.f32 %v1908, 1.0
    %v1910 = vrcp.pop %v1909
    %v1911 = vmul.f32 1.0, %v1910
    %v1912 = vxor.u32 %v1903, 2147483648
    %v1913 = vmul.f32 %v1912, 1.442695
    %v1914 = vpow.pop %v1913
    %v1915 = vadd.f32 %v1914, 1.0
    %v1916 = vrcp.pop %v1915
    %v1917 = vmul.f32 1.0, %v1916
    %v1918 = vtanh.pop %v1904
    %v1919 = vxor.u32 %v1905, 2147483648
    %v1920 = vmul.f32 %v1919, 1.442695
    %v1921 = vpow.pop %v1920
    %v1922 = vadd.f32 %v1921, 1.0
    %v1923 = vrcp.pop %v1922
    %v1924 = vmul.f32 1.0, %v1923
    %v1925 = vmul.f32 %v1917, %v1809
    %v1926 = vmul.f32 %v1911, %v1918
    %v1927 = vadd.f32 %v1925, %v1926
    %v1928 = vtanh.pop %v1927
    %v1929 = vmul.f32 %v1924, %v1928
    %s1930 = smul.u32 2, 4
    %s1931 = smul.addr %s1930, 8
    %s1932 = scalar_lea.vmem [#allocation2], %s1931
    %v1933 = vld [vmem:[%s1932] sm:$0xff]
    %v1934 = vld [vmem:[%s1932 + $0x8] sm:$0xff]
    %v1935 = vld [vmem:[%s1932 + $0x10] sm:$0xff]
    %v1936 = vld [vmem:[%s1932 + $0x18] sm:$0xff]
    %v1937 = vpack.c.bf16 %v1929, %v1929
    %1938 = vmatprep.subr.bf16.mxu0 %v1639
    %1939 = vmatpush1.bf16.msra.mxu0 %v1638
    %1940 = vmatprep.subr.bf16.mxu0 %v1643
    %1941 = vmatpush1.bf16.msra.mxu0 %v1642
    %1942 = vmatprep.subr.bf16.mxu0 %v1647
    %1943 = vmatpush1.bf16.msra.mxu0 %v1646
    %1944 = vmatprep.subr.bf16.mxu0 %v1651
    %1945 = vmatpush1.bf16.msra.mxu0 %v1650
    %1946 = vmatprep.subr.bf16.mxu0 %v1655
    %1947 = vmatpush1.bf16.msra.mxu0 %v1654
    %1948 = vmatprep.subr.bf16.mxu0 %v1659
    %1949 = vmatpush1.bf16.msra.mxu0 %v1658
    %1950 = vmatprep.subr.bf16.mxu0 %v1663
    %1951 = vmatpush1.bf16.msra.mxu0 %v1662
    %1952 = vmatprep.subr.bf16.mxu0 %v1667
    %1953 = vmatpush1.bf16.msra.mxu0 %v1666
    %1954 = vmatprep.subr.bf16.mxu0 0
    %1955 = vmatpush1.bf16.msra.mxu0 0
    %1956 = vmatprep.subr.bf16.mxu0 0
    %1957 = vmatpush1.bf16.msra.mxu0 0
    %1958 = vmatprep.subr.bf16.mxu0 0
    %1959 = vmatpush1.bf16.msra.mxu0 0
    %1960 = vmatprep.subr.bf16.mxu0 0
    %1961 = vmatpush1.bf16.msra.mxu0 0
    %1962 = vmatprep.subr.bf16.mxu0 0
    %1963 = vmatpush1.bf16.msra.mxu0 0
    %1964 = vmatprep.subr.bf16.mxu0 0
    %1965 = vmatpush1.bf16.msra.mxu0 0
    %1966 = vmatprep.subr.bf16.mxu0 0
    %1967 = vmatpush1.bf16.msra.mxu0 0
    %1968 = vmatprep.subr.bf16.mxu0 0
    %1969 = vmatpush1.bf16.msra.mxu0 0
    %1970 = vmatprep.mubr.bf16.mxu0 0
    %1971 = vmatmul.mubr.bf16.gmra.mrb[0].mxu0 %v1937
    %v1972 = vpop.f32.mrb[0].mxu0
    %v1973 = vadd.f32 0.0, %v1972
    %v1974 = vpop.f32.mrb[0].mxu0
    %v1975 = vadd.f32 0.0, %v1974
    %v1976 = vpop.f32.mrb[0].mxu0
    %v1977 = vpop.f32.mrb[0].mxu0
    %1978 = vdwg.mxu0
    %1979 = vmatprep.subr.bf16.mxu0 %v1641
    %1980 = vmatpush1.bf16.msra.mxu0 %v1640
    %1981 = vmatprep.subr.bf16.mxu0 %v1645
    %1982 = vmatpush1.bf16.msra.mxu0 %v1644
    %1983 = vmatprep.subr.bf16.mxu0 %v1649
    %1984 = vmatpush1.bf16.msra.mxu0 %v1648
    %1985 = vmatprep.subr.bf16.mxu0 %v1653
    %1986 = vmatpush1.bf16.msra.mxu0 %v1652
    %1987 = vmatprep.subr.bf16.mxu0 %v1657
    %1988 = vmatpush1.bf16.msra.mxu0 %v1656
    %1989 = vmatprep.subr.bf16.mxu0 %v1661
    %1990 = vmatpush1.bf16.msra.mxu0 %v1660
    %1991 = vmatprep.subr.bf16.mxu0 %v1665
    %1992 = vmatpush1.bf16.msra.mxu0 %v1664
    %1993 = vmatprep.subr.bf16.mxu0 %v1669
    %1994 = vmatpush1.bf16.msra.mxu0 %v1668
    %1995 = vmatprep.subr.bf16.mxu0 0
    %1996 = vmatpush1.bf16.msra.mxu0 0
    %1997 = vmatprep.subr.bf16.mxu0 0
    %1998 = vmatpush1.bf16.msra.mxu0 0
    %1999 = vmatprep.subr.bf16.mxu0 0
    %2000 = vmatpush1.bf16.msra.mxu0 0
    %2001 = vmatprep.subr.bf16.mxu0 0
    %2002 = vmatpush1.bf16.msra.mxu0 0
    %2003 = vmatprep.subr.bf16.mxu0 0
    %2004 = vmatpush1.bf16.msra.mxu0 0
    %2005 = vmatprep.subr.bf16.mxu0 0
    %2006 = vmatpush1.bf16.msra.mxu0 0
    %2007 = vmatprep.subr.bf16.mxu0 0
    %2008 = vmatpush1.bf16.msra.mxu0 0
    %2009 = vmatprep.subr.bf16.mxu0 0
    %2010 = vmatpush1.bf16.msra.mxu0 0
    %2011 = vmatprep.mubr.bf16.mxu0 0
    %2012 = vmatmul.mubr.bf16.gmra.mrb[0].mxu0 %v1937
    %v2013 = vpop.f32.mrb[0].mxu0
    %v2014 = vadd.f32 0.0, %v2013
    %v2015 = vpop.f32.mrb[0].mxu0
    %v2016 = vadd.f32 0.0, %v2015
    %v2017 = vpop.f32.mrb[0].mxu0
    %v2018 = vpop.f32.mrb[0].mxu0
    %2019 = vdwg.mxu0
    %v2020 = vadd.f32 %v1933, %v1973
    %v2021 = vadd.f32 %v1934, %v1975
    %v2022 = vadd.f32 %v1935, %v2014
    %v2023 = vadd.f32 %v1936, %v2016
    %v2024 = vxor.u32 %v2020, 2147483648
    %v2025 = vmul.f32 %v2024, 1.442695
    %v2026 = vpow.pop %v2025
    %v2027 = vadd.f32 %v2026, 1.0
    %v2028 = vrcp.pop %v2027
    %v2029 = vmul.f32 1.0, %v2028
    %v2030 = vxor.u32 %v2021, 2147483648
    %v2031 = vmul.f32 %v2030, 1.442695
    %v2032 = vpow.pop %v2031
    %v2033 = vadd.f32 %v2032, 1.0
    %v2034 = vrcp.pop %v2033
    %v2035 = vmul.f32 1.0, %v2034
    %v2036 = vtanh.pop %v2022
    %v2037 = vxor.u32 %v2023, 2147483648
    %v2038 = vmul.f32 %v2037, 1.442695
    %v2039 = vpow.pop %v2038
    %v2040 = vadd.f32 %v2039, 1.0
    %v2041 = vrcp.pop %v2040
    %v2042 = vmul.f32 1.0, %v2041
    %v2043 = vmul.f32 %v2035, %v1927
    %v2044 = vmul.f32 %v2029, %v2036
    %v2045 = vadd.f32 %v2043, %v2044
    %v2046 = vtanh.pop %v2045
    %v2047 = vmul.f32 %v2042, %v2046
    %s2048 = smul.u32 3, 4
    %s2049 = smul.addr %s2048, 8
    %s2050 = scalar_lea.vmem [#allocation2], %s2049
    %v2051 = vld [vmem:[%s2050] sm:$0xff]
    %v2052 = vld [vmem:[%s2050 + $0x8] sm:$0xff]
    %v2053 = vld [vmem:[%s2050 + $0x10] sm:$0xff]
    %v2054 = vld [vmem:[%s2050 + $0x18] sm:$0xff]
    %v2055 = vpack.c.bf16 %v2047, %v2047
    %2056 = vmatprep.subr.bf16.mxu0 %v1639
    %2057 = vmatpush1.bf16.msra.mxu0 %v1638
    %2058 = vmatprep.subr.bf16.mxu0 %v1643
    %2059 = vmatpush1.bf16.msra.mxu0 %v1642
    %2060 = vmatprep.subr.bf16.mxu0 %v1647
    %2061 = vmatpush1.bf16.msra.mxu0 %v1646
    %2062 = vmatprep.subr.bf16.mxu0 %v1651
    %2063 = vmatpush1.bf16.msra.mxu0 %v1650
    %2064 = vmatprep.subr.bf16.mxu0 %v1655
    %2065 = vmatpush1.bf16.msra.mxu0 %v1654
    %2066 = vmatprep.subr.bf16.mxu0 %v1659
    %2067 = vmatpush1.bf16.msra.mxu0 %v1658
    %2068 = vmatprep.subr.bf16.mxu0 %v1663
    %2069 = vmatpush1.bf16.msra.mxu0 %v1662
    %2070 = vmatprep.subr.bf16.mxu0 %v1667
    %2071 = vmatpush1.bf16.msra.mxu0 %v1666
    %2072 = vmatprep.subr.bf16.mxu0 0
    %2073 = vmatpush1.bf16.msra.mxu0 0
    %2074 = vmatprep.subr.bf16.mxu0 0
    %2075 = vmatpush1.bf16.msra.mxu0 0
    %2076 = vmatprep.subr.bf16.mxu0 0
    %2077 = vmatpush1.bf16.msra.mxu0 0
    %2078 = vmatprep.subr.bf16.mxu0 0
    %2079 = vmatpush1.bf16.msra.mxu0 0
    %2080 = vmatprep.subr.bf16.mxu0 0
    %2081 = vmatpush1.bf16.msra.mxu0 0
    %2082 = vmatprep.subr.bf16.mxu0 0
    %2083 = vmatpush1.bf16.msra.mxu0 0
    %2084 = vmatprep.subr.bf16.mxu0 0
    %2085 = vmatpush1.bf16.msra.mxu0 0
    %2086 = vmatprep.subr.bf16.mxu0 0
    %2087 = vmatpush1.bf16.msra.mxu0 0
    %2088 = vmatprep.mubr.bf16.mxu0 0
    %2089 = vmatmul.mubr.bf16.gmra.mrb[0].mxu0 %v2055
    %v2090 = vpop.f32.mrb[0].mxu0
    %v2091 = vadd.f32 0.0, %v2090
    %v2092 = vpop.f32.mrb[0].mxu0
    %v2093 = vadd.f32 0.0, %v2092
    %v2094 = vpop.f32.mrb[0].mxu0
    %v2095 = vpop.f32.mrb[0].mxu0
    %2096 = vdwg.mxu0
    %2097 = vmatprep.subr.bf16.mxu0 %v1641
    %2098 = vmatpush1.bf16.msra.mxu0 %v1640
    %2099 = vmatprep.subr.bf16.mxu0 %v1645
    %2100 = vmatpush1.bf16.msra.mxu0 %v1644
    %2101 = vmatprep.subr.bf16.mxu0 %v1649
    %2102 = vmatpush1.bf16.msra.mxu0 %v1648
    %2103 = vmatprep.subr.bf16.mxu0 %v1653
    %2104 = vmatpush1.bf16.msra.mxu0 %v1652
    %2105 = vmatprep.subr.bf16.mxu0 %v1657
    %2106 = vmatpush1.bf16.msra.mxu0 %v1656
    %2107 = vmatprep.subr.bf16.mxu0 %v1661
    %2108 = vmatpush1.bf16.msra.mxu0 %v1660
    %2109 = vmatprep.subr.bf16.mxu0 %v1665
    %2110 = vmatpush1.bf16.msra.mxu0 %v1664
    %2111 = vmatprep.subr.bf16.mxu0 %v1669
    %2112 = vmatpush1.bf16.msra.mxu0 %v1668
    %2113 = vmatprep.subr.bf16.mxu0 0
    %2114 = vmatpush1.bf16.msra.mxu0 0
    %2115 = vmatprep.subr.bf16.mxu0 0
    %2116 = vmatpush1.bf16.msra.mxu0 0
    %2117 = vmatprep.subr.bf16.mxu0 0
    %2118 = vmatpush1.bf16.msra.mxu0 0
    %2119 = vmatprep.subr.bf16.mxu0 0
    %2120 = vmatpush1.bf16.msra.mxu0 0
    %2121 = vmatprep.subr.bf16.mxu0 0
    %2122 = vmatpush1.bf16.msra.mxu0 0
    %2123 = vmatprep.subr.bf16.mxu0 0
    %2124 = vmatpush1.bf16.msra.mxu0 0
    %2125 = vmatprep.subr.bf16.mxu0 0
    %2126 = vmatpush1.bf16.msra.mxu0 0
    %2127 = vmatprep.subr.bf16.mxu0 0
    %2128 = vmatpush1.bf16.msra.mxu0 0
    %2129 = vmatprep.mubr.bf16.mxu0 0
    %2130 = vmatmul.mubr.bf16.gmra.mrb[0].mxu0 %v2055
    %v2131 = vpop.f32.mrb[0].mxu0
    %v2132 = vadd.f32 0.0, %v2131
    %v2133 = vpop.f32.mrb[0].mxu0
    %v2134 = vadd.f32 0.0, %v2133
    %v2135 = vpop.f32.mrb[0].mxu0
    %v2136 = vpop.f32.mrb[0].mxu0
    %2137 = vdwg.mxu0
    %v2138 = vadd.f32 %v2051, %v2091
    %v2139 = vadd.f32 %v2052, %v2093
    %v2140 = vadd.f32 %v2053, %v2132
    %v2141 = vadd.f32 %v2054, %v2134
    %v2142 = vxor.u32 %v2138, 2147483648
    %v2143 = vmul.f32 %v2142, 1.442695
    %v2144 = vpow.pop %v2143
    %v2145 = vadd.f32 %v2144, 1.0
    %v2146 = vrcp.pop %v2145
    %v2147 = vmul.f32 1.0, %v2146
    %v2148 = vxor.u32 %v2139, 2147483648
    %v2149 = vmul.f32 %v2148, 1.442695
    %v2150 = vpow.pop %v2149
    %v2151 = vadd.f32 %v2150, 1.0
    %v2152 = vrcp.pop %v2151
    %v2153 = vmul.f32 1.0, %v2152
    %v2154 = vtanh.pop %v2140
    %v2155 = vxor.u32 %v2141, 2147483648
    %v2156 = vmul.f32 %v2155, 1.442695
    %v2157 = vpow.pop %v2156
    %v2158 = vadd.f32 %v2157, 1.0
    %v2159 = vrcp.pop %v2158
    %v2160 = vmul.f32 1.0, %v2159
    %v2161 = vmul.f32 %v2153, %v2045
    %v2162 = vmul.f32 %v2147, %v2154
    %v2163 = vadd.f32 %v2161, %v2162
    %v2164 = vtanh.pop %v2163
    %v2165 = vmul.f32 %v2160, %v2164
    %s2166 = smul.u32 4, 4
    %s2167 = smul.addr %s2166, 8
    %s2168 = scalar_lea.vmem [#allocation2], %s2167
    %v2169 = vld [vmem:[%s2168] sm:$0xff]
    %v2170 = vld [vmem:[%s2168 + $0x8] sm:$0xff]
    %v2171 = vld [vmem:[%s2168 + $0x10] sm:$0xff]
    %v2172 = vld [vmem:[%s2168 + $0x18] sm:$0xff]
    %v2173 = vpack.c.bf16 %v2165, %v2165
    %2174 = vmatprep.subr.bf16.mxu0 %v1639
    %2175 = vmatpush1.bf16.msra.mxu0 %v1638
    %2176 = vmatprep.subr.bf16.mxu0 %v1643
    %2177 = vmatpush1.bf16.msra.mxu0 %v1642
    %2178 = vmatprep.subr.bf16.mxu0 %v1647
    %2179 = vmatpush1.bf16.msra.mxu0 %v1646
    %2180 = vmatprep.subr.bf16.mxu0 %v1651
    %2181 = vmatpush1.bf16.msra.mxu0 %v1650
    %2182 = vmatprep.subr.bf16.mxu0 %v1655
    %2183 = vmatpush1.bf16.msra.mxu0 %v1654
    %2184 = vmatprep.subr.bf16.mxu0 %v1659
    %2185 = vmatpush1.bf16.msra.mxu0 %v1658
    %2186 = vmatprep.subr.bf16.mxu0 %v1663
    %2187 = vmatpush1.bf16.msra.mxu0 %v1662
    %2188 = vmatprep.subr.bf16.mxu0 %v1667
    %2189 = vmatpush1.bf16.msra.mxu0 %v1666
    %2190 = vmatprep.subr.bf16.mxu0 0
    %2191 = vmatpush1.bf16.msra.mxu0 0
    %2192 = vmatprep.subr.bf16.mxu0 0
    %2193 = vmatpush1.bf16.msra.mxu0 0
    %2194 = vmatprep.subr.bf16.mxu0 0
    %2195 = vmatpush1.bf16.msra.mxu0 0
    %2196 = vmatprep.subr.bf16.mxu0 0
    %2197 = vmatpush1.bf16.msra.mxu0 0
    %2198 = vmatprep.subr.bf16.mxu0 0
    %2199 = vmatpush1.bf16.msra.mxu0 0
    %2200 = vmatprep.subr.bf16.mxu0 0
    %2201 = vmatpush1.bf16.msra.mxu0 0
    %2202 = vmatprep.subr.bf16.mxu0 0
    %2203 = vmatpush1.bf16.msra.mxu0 0
    %2204 = vmatprep.subr.bf16.mxu0 0
    %2205 = vmatpush1.bf16.msra.mxu0 0
    %2206 = vmatprep.mubr.bf16.mxu0 0
    %2207 = vmatmul.mubr.bf16.gmra.mrb[0].mxu0 %v2173
    %v2208 = vpop.f32.mrb[0].mxu0
    %v2209 = vadd.f32 0.0, %v2208
    %v2210 = vpop.f32.mrb[0].mxu0
    %v2211 = vadd.f32 0.0, %v2210
    %v2212 = vpop.f32.mrb[0].mxu0
    %v2213 = vpop.f32.mrb[0].mxu0
    %2214 = vdwg.mxu0
    %2215 = vmatprep.subr.bf16.mxu0 %v1641
    %2216 = vmatpush1.bf16.msra.mxu0 %v1640
    %2217 = vmatprep.subr.bf16.mxu0 %v1645
    %2218 = vmatpush1.bf16.msra.mxu0 %v1644
    %2219 = vmatprep.subr.bf16.mxu0 %v1649
    %2220 = vmatpush1.bf16.msra.mxu0 %v1648
    %2221 = vmatprep.subr.bf16.mxu0 %v1653
    %2222 = vmatpush1.bf16.msra.mxu0 %v1652
    %2223 = vmatprep.subr.bf16.mxu0 %v1657
    %2224 = vmatpush1.bf16.msra.mxu0 %v1656
    %2225 = vmatprep.subr.bf16.mxu0 %v1661
    %2226 = vmatpush1.bf16.msra.mxu0 %v1660
    %2227 = vmatprep.subr.bf16.mxu0 %v1665
    %2228 = vmatpush1.bf16.msra.mxu0 %v1664
    %2229 = vmatprep.subr.bf16.mxu0 %v1669
    %2230 = vmatpush1.bf16.msra.mxu0 %v1668
    %2231 = vmatprep.subr.bf16.mxu0 0
    %2232 = vmatpush1.bf16.msra.mxu0 0
    %2233 = vmatprep.subr.bf16.mxu0 0
    %2234 = vmatpush1.bf16.msra.mxu0 0
    %2235 = vmatprep.subr.bf16.mxu0 0
    %2236 = vmatpush1.bf16.msra.mxu0 0
    %2237 = vmatprep.subr.bf16.mxu0 0
    %2238 = vmatpush1.bf16.msra.mxu0 0
    %2239 = vmatprep.subr.bf16.mxu0 0
    %2240 = vmatpush1.bf16.msra.mxu0 0
    %2241 = vmatprep.subr.bf16.mxu0 0
    %2242 = vmatpush1.bf16.msra.mxu0 0
    %2243 = vmatprep.subr.bf16.mxu0 0
    %2244 = vmatpush1.bf16.msra.mxu0 0
    %2245 = vmatprep.subr.bf16.mxu0 0
    %2246 = vmatpush1.bf16.msra.mxu0 0
    %2247 = vmatprep.mubr.bf16.mxu0 0
    %2248 = vmatmul.mubr.bf16.gmra.mrb[0].mxu0 %v2173
    %v2249 = vpop.f32.mrb[0].mxu0
    %v2250 = vadd.f32 0.0, %v2249
    %v2251 = vpop.f32.mrb[0].mxu0
    %v2252 = vadd.f32 0.0, %v2251
    %v2253 = vpop.f32.mrb[0].mxu0
    %v2254 = vpop.f32.mrb[0].mxu0
    %2255 = vdwg.mxu0
    %v2256 = vadd.f32 %v2169, %v2209
    %v2257 = vadd.f32 %v2170, %v2211
    %v2258 = vadd.f32 %v2171, %v2250
    %v2259 = vadd.f32 %v2172, %v2252
    %v2260 = vxor.u32 %v2256, 2147483648
    %v2261 = vmul.f32 %v2260, 1.442695
    %v2262 = vpow.pop %v2261
    %v2263 = vadd.f32 %v2262, 1.0
    %v2264 = vrcp.pop %v2263
    %v2265 = vmul.f32 1.0, %v2264
    %v2266 = vxor.u32 %v2257, 2147483648
    %v2267 = vmul.f32 %v2266, 1.442695
    %v2268 = vpow.pop %v2267
    %v2269 = vadd.f32 %v2268, 1.0
    %v2270 = vrcp.pop %v2269
    %v2271 = vmul.f32 1.0, %v2270
    %v2272 = vtanh.pop %v2258
    %v2273 = vxor.u32 %v2259, 2147483648
    %v2274 = vmul.f32 %v2273, 1.442695
    %v2275 = vpow.pop %v2274
    %v2276 = vadd.f32 %v2275, 1.0
    %v2277 = vrcp.pop %v2276
    %v2278 = vmul.f32 1.0, %v2277
    %v2279 = vmul.f32 %v2271, %v2163
    %v2280 = vmul.f32 %v2265, %v2272
    %v2281 = vadd.f32 %v2279, %v2280
    %v2282 = vtanh.pop %v2281
    %v2283 = vmul.f32 %v2278, %v2282
    %s2284 = smul.u32 5, 4
    %s2285 = smul.addr %s2284, 8
    %s2286 = scalar_lea.vmem [#allocation2], %s2285
    %v2287 = vld [vmem:[%s2286] sm:$0xff]
    %v2288 = vld [vmem:[%s2286 + $0x8] sm:$0xff]
    %v2289 = vld [vmem:[%s2286 + $0x10] sm:$0xff]
    %v2290 = vld [vmem:[%s2286 + $0x18] sm:$0xff]
    %v2291 = vpack.c.bf16 %v2283, %v2283
    %2292 = vmatprep.subr.bf16.mxu0 %v1639
    %2293 = vmatpush1.bf16.msra.mxu0 %v1638
    %2294 = vmatprep.subr.bf16.mxu0 %v1643
    %2295 = vmatpush1.bf16.msra.mxu0 %v1642
    %2296 = vmatprep.subr.bf16.mxu0 %v1647
    %2297 = vmatpush1.bf16.msra.mxu0 %v1646
    %2298 = vmatprep.subr.bf16.mxu0 %v1651
    %2299 = vmatpush1.bf16.msra.mxu0 %v1650
    %2300 = vmatprep.subr.bf16.mxu0 %v1655
    %2301 = vmatpush1.bf16.msra.mxu0 %v1654
    %2302 = vmatprep.subr.bf16.mxu0 %v1659
    %2303 = vmatpush1.bf16.msra.mxu0 %v1658
    %2304 = vmatprep.subr.bf16.mxu0 %v1663
    %2305 = vmatpush1.bf16.msra.mxu0 %v1662
    %2306 = vmatprep.subr.bf16.mxu0 %v1667
    %2307 = vmatpush1.bf16.msra.mxu0 %v1666
    %2308 = vmatprep.subr.bf16.mxu0 0
    %2309 = vmatpush1.bf16.msra.mxu0 0
    %2310 = vmatprep.subr.bf16.mxu0 0
    %2311 = vmatpush1.bf16.msra.mxu0 0
    %2312 = vmatprep.subr.bf16.mxu0 0
    %2313 = vmatpush1.bf16.msra.mxu0 0
    %2314 = vmatprep.subr.bf16.mxu0 0
    %2315 = vmatpush1.bf16.msra.mxu0 0
    %2316 = vmatprep.subr.bf16.mxu0 0
    %2317 = vmatpush1.bf16.msra.mxu0 0
    %2318 = vmatprep.subr.bf16.mxu0 0
    %2319 = vmatpush1.bf16.msra.mxu0 0
    %2320 = vmatprep.subr.bf16.mxu0 0
    %2321 = vmatpush1.bf16.msra.mxu0 0
    %2322 = vmatprep.subr.bf16.mxu0 0
    %2323 = vmatpush1.bf16.msra.mxu0 0
    %2324 = vmatprep.mubr.bf16.mxu0 0
    %2325 = vmatmul.mubr.bf16.gmra.mrb[0].mxu0 %v2291
    %v2326 = vpop.f32.mrb[0].mxu0
    %v2327 = vadd.f32 0.0, %v2326
    %v2328 = vpop.f32.mrb[0].mxu0
    %v2329 = vadd.f32 0.0, %v2328
    %v2330 = vpop.f32.mrb[0].mxu0
    %v2331 = vpop.f32.mrb[0].mxu0
    %2332 = vdwg.mxu0
    %2333 = vmatprep.subr.bf16.mxu0 %v1641
    %2334 = vmatpush1.bf16.msra.mxu0 %v1640
    %2335 = vmatprep.subr.bf16.mxu0 %v1645
    %2336 = vmatpush1.bf16.msra.mxu0 %v1644
    %2337 = vmatprep.subr.bf16.mxu0 %v1649
    %2338 = vmatpush1.bf16.msra.mxu0 %v1648
    %2339 = vmatprep.subr.bf16.mxu0 %v1653
    %2340 = vmatpush1.bf16.msra.mxu0 %v1652
    %2341 = vmatprep.subr.bf16.mxu0 %v1657
    %2342 = vmatpush1.bf16.msra.mxu0 %v1656
    %2343 = vmatprep.subr.bf16.mxu0 %v1661
    %2344 = vmatpush1.bf16.msra.mxu0 %v1660
    %2345 = vmatprep.subr.bf16.mxu0 %v1665
    %2346 = vmatpush1.bf16.msra.mxu0 %v1664
    %2347 = vmatprep.subr.bf16.mxu0 %v1669
    %2348 = vmatpush1.bf16.msra.mxu0 %v1668
    %2349 = vmatprep.subr.bf16.mxu0 0
    %2350 = vmatpush1.bf16.msra.mxu0 0
    %2351 = vmatprep.subr.bf16.mxu0 0
    %2352 = vmatpush1.bf16.msra.mxu0 0
    %2353 = vmatprep.subr.bf16.mxu0 0
    %2354 = vmatpush1.bf16.msra.mxu0 0
    %2355 = vmatprep.subr.bf16.mxu0 0
    %2356 = vmatpush1.bf16.msra.mxu0 0
    %2357 = vmatprep.subr.bf16.mxu0 0
    %2358 = vmatpush1.bf16.msra.mxu0 0
    %2359 = vmatprep.subr.bf16.mxu0 0
    %2360 = vmatpush1.bf16.msra.mxu0 0
    %2361 = vmatprep.subr.bf16.mxu0 0
    %2362 = vmatpush1.bf16.msra.mxu0 0
    %2363 = vmatprep.subr.bf16.mxu0 0
    %2364 = vmatpush1.bf16.msra.mxu0 0
    %2365 = vmatprep.mubr.bf16.mxu0 0
    %2366 = vmatmul.mubr.bf16.gmra.mrb[0].mxu0 %v2291
    %v2367 = vpop.f32.mrb[0].mxu0
    %v2368 = vadd.f32 0.0, %v2367
    %v2369 = vpop.f32.mrb[0].mxu0
    %v2370 = vadd.f32 0.0, %v2369
    %v2371 = vpop.f32.mrb[0].mxu0
    %v2372 = vpop.f32.mrb[0].mxu0
    %2373 = vdwg.mxu0
    %v2374 = vadd.f32 %v2287, %v2327
    %v2375 = vadd.f32 %v2288, %v2329
    %v2376 = vadd.f32 %v2289, %v2368
    %v2377 = vadd.f32 %v2290, %v2370
    %v2378 = vxor.u32 %v2374, 2147483648
    %v2379 = vmul.f32 %v2378, 1.442695
    %v2380 = vpow.pop %v2379
    %v2381 = vadd.f32 %v2380, 1.0
    %v2382 = vrcp.pop %v2381
    %v2383 = vmul.f32 1.0, %v2382
    %v2384 = vxor.u32 %v2375, 2147483648
    %v2385 = vmul.f32 %v2384, 1.442695
    %v2386 = vpow.pop %v2385
    %v2387 = vadd.f32 %v2386, 1.0
    %v2388 = vrcp.pop %v2387
    %v2389 = vmul.f32 1.0, %v2388
    %v2390 = vtanh.pop %v2376
    %v2391 = vxor.u32 %v2377, 2147483648
    %v2392 = vmul.f32 %v2391, 1.442695
    %v2393 = vpow.pop %v2392
    %v2394 = vadd.f32 %v2393, 1.0
    %v2395 = vrcp.pop %v2394
    %v2396 = vmul.f32 1.0, %v2395
    %v2397 = vmul.f32 %v2389, %v2281
    %v2398 = vmul.f32 %v2383, %v2390
    %v2399 = vadd.f32 %v2397, %v2398
    %v2400 = vtanh.pop %v2399
    %v2401 = vmul.f32 %v2396, %v2400
    %s2402 = smul.u32 6, 4
    %s2403 = smul.addr %s2402, 8
    %s2404 = scalar_lea.vmem [#allocation2], %s2403
    %v2405 = vld [vmem:[%s2404] sm:$0xff]
    %v2406 = vld [vmem:[%s2404 + $0x8] sm:$0xff]
    %v2407 = vld [vmem:[%s2404 + $0x10] sm:$0xff]
    %v2408 = vld [vmem:[%s2404 + $0x18] sm:$0xff]
    %v2409 = vpack.c.bf16 %v2401, %v2401
    %2410 = vmatprep.subr.bf16.mxu0 %v1639
    %2411 = vmatpush1.bf16.msra.mxu0 %v1638
    %2412 = vmatprep.subr.bf16.mxu0 %v1643
    %2413 = vmatpush1.bf16.msra.mxu0 %v1642
    %2414 = vmatprep.subr.bf16.mxu0 %v1647
    %2415 = vmatpush1.bf16.msra.mxu0 %v1646
    %2416 = vmatprep.subr.bf16.mxu0 %v1651
    %2417 = vmatpush1.bf16.msra.mxu0 %v1650
    %2418 = vmatprep.subr.bf16.mxu0 %v1655
    %2419 = vmatpush1.bf16.msra.mxu0 %v1654
    %2420 = vmatprep.subr.bf16.mxu0 %v1659
    %2421 = vmatpush1.bf16.msra.mxu0 %v1658
    %2422 = vmatprep.subr.bf16.mxu0 %v1663
    %2423 = vmatpush1.bf16.msra.mxu0 %v1662
    %2424 = vmatprep.subr.bf16.mxu0 %v1667
    %2425 = vmatpush1.bf16.msra.mxu0 %v1666
    %2426 = vmatprep.subr.bf16.mxu0 0
    %2427 = vmatpush1.bf16.msra.mxu0 0
    %2428 = vmatprep.subr.bf16.mxu0 0
    %2429 = vmatpush1.bf16.msra.mxu0 0
    %2430 = vmatprep.subr.bf16.mxu0 0
    %2431 = vmatpush1.bf16.msra.mxu0 0
    %2432 = vmatprep.subr.bf16.mxu0 0
    %2433 = vmatpush1.bf16.msra.mxu0 0
    %2434 = vmatprep.subr.bf16.mxu0 0
    %2435 = vmatpush1.bf16.msra.mxu0 0
    %2436 = vmatprep.subr.bf16.mxu0 0
    %2437 = vmatpush1.bf16.msra.mxu0 0
    %2438 = vmatprep.subr.bf16.mxu0 0
    %2439 = vmatpush1.bf16.msra.mxu0 0
    %2440 = vmatprep.subr.bf16.mxu0 0
    %2441 = vmatpush1.bf16.msra.mxu0 0
    %2442 = vmatprep.mubr.bf16.mxu0 0
    %2443 = vmatmul.mubr.bf16.gmra.mrb[0].mxu0 %v2409
    %v2444 = vpop.f32.mrb[0].mxu0
    %v2445 = vadd.f32 0.0, %v2444
    %v2446 = vpop.f32.mrb[0].mxu0
    %v2447 = vadd.f32 0.0, %v2446
    %v2448 = vpop.f32.mrb[0].mxu0
    %v2449 = vpop.f32.mrb[0].mxu0
    %2450 = vdwg.mxu0
    %2451 = vmatprep.subr.bf16.mxu0 %v1641
    %2452 = vmatpush1.bf16.msra.mxu0 %v1640
    %2453 = vmatprep.subr.bf16.mxu0 %v1645
    %2454 = vmatpush1.bf16.msra.mxu0 %v1644
    %2455 = vmatprep.subr.bf16.mxu0 %v1649
    %2456 = vmatpush1.bf16.msra.mxu0 %v1648
    %2457 = vmatprep.subr.bf16.mxu0 %v1653
    %2458 = vmatpush1.bf16.msra.mxu0 %v1652
    %2459 = vmatprep.subr.bf16.mxu0 %v1657
    %2460 = vmatpush1.bf16.msra.mxu0 %v1656
    %2461 = vmatprep.subr.bf16.mxu0 %v1661
    %2462 = vmatpush1.bf16.msra.mxu0 %v1660
    %2463 = vmatprep.subr.bf16.mxu0 %v1665
    %2464 = vmatpush1.bf16.msra.mxu0 %v1664
    %2465 = vmatprep.subr.bf16.mxu0 %v1669
    %2466 = vmatpush1.bf16.msra.mxu0 %v1668
    %2467 = vmatprep.subr.bf16.mxu0 0
    %2468 = vmatpush1.bf16.msra.mxu0 0
    %2469 = vmatprep.subr.bf16.mxu0 0
    %2470 = vmatpush1.bf16.msra.mxu0 0
    %2471 = vmatprep.subr.bf16.mxu0 0
    %2472 = vmatpush1.bf16.msra.mxu0 0
    %2473 = vmatprep.subr.bf16.mxu0 0
    %2474 = vmatpush1.bf16.msra.mxu0 0
    %2475 = vmatprep.subr.bf16.mxu0 0
    %2476 = vmatpush1.bf16.msra.mxu0 0
    %2477 = vmatprep.subr.bf16.mxu0 0
    %2478 = vmatpush1.bf16.msra.mxu0 0
    %2479 = vmatprep.subr.bf16.mxu0 0
    %2480 = vmatpush1.bf16.msra.mxu0 0
    %2481 = vmatprep.subr.bf16.mxu0 0
    %2482 = vmatpush1.bf16.msra.mxu0 0
    %2483 = vmatprep.mubr.bf16.mxu0 0
    %2484 = vmatmul.mubr.bf16.gmra.mrb[0].mxu0 %v2409
    %v2485 = vpop.f32.mrb[0].mxu0
    %v2486 = vadd.f32 0.0, %v2485
    %v2487 = vpop.f32.mrb[0].mxu0
    %v2488 = vadd.f32 0.0, %v2487
    %v2489 = vpop.f32.mrb[0].mxu0
    %v2490 = vpop.f32.mrb[0].mxu0
    %2491 = vdwg.mxu0
    %v2492 = vadd.f32 %v2405, %v2445
    %v2493 = vadd.f32 %v2406, %v2447
    %v2494 = vadd.f32 %v2407, %v2486
    %v2495 = vadd.f32 %v2408, %v2488
    %v2496 = vxor.u32 %v2492, 2147483648
    %v2497 = vmul.f32 %v2496, 1.442695
    %v2498 = vpow.pop %v2497
    %v2499 = vadd.f32 %v2498, 1.0
    %v2500 = vrcp.pop %v2499
    %v2501 = vmul.f32 1.0, %v2500
    %v2502 = vxor.u32 %v2493, 2147483648
    %v2503 = vmul.f32 %v2502, 1.442695
    %v2504 = vpow.pop %v2503
    %v2505 = vadd.f32 %v2504, 1.0
    %v2506 = vrcp.pop %v2505
    %v2507 = vmul.f32 1.0, %v2506
    %v2508 = vtanh.pop %v2494
    %v2509 = vxor.u32 %v2495, 2147483648
    %v2510 = vmul.f32 %v2509, 1.442695
    %v2511 = vpow.pop %v2510
    %v2512 = vadd.f32 %v2511, 1.0
    %v2513 = vrcp.pop %v2512
    %v2514 = vmul.f32 1.0, %v2513
    %v2515 = vmul.f32 %v2507, %v2399
    %v2516 = vmul.f32 %v2501, %v2508
    %v2517 = vadd.f32 %v2515, %v2516
    %v2518 = vtanh.pop %v2517
    %v2519 = vmul.f32 %v2514, %v2518
    %s2520 = smul.u32 7, 4
    %s2521 = smul.addr %s2520, 8
    %s2522 = scalar_lea.vmem [#allocation2], %s2521
    %v2523 = vld [vmem:[%s2522] sm:$0xff]
    %v2524 = vld [vmem:[%s2522 + $0x8] sm:$0xff]
    %v2525 = vld [vmem:[%s2522 + $0x10] sm:$0xff]
    %v2526 = vld [vmem:[%s2522 + $0x18] sm:$0xff]
    %v2527 = vpack.c.bf16 %v2519, %v2519
    %2528 = vmatprep.subr.bf16.mxu0 %v1639
    %2529 = vmatpush1.bf16.msra.mxu0 %v1638
    %2530 = vmatprep.subr.bf16.mxu0 %v1643
    %2531 = vmatpush1.bf16.msra.mxu0 %v1642
    %2532 = vmatprep.subr.bf16.mxu0 %v1647
    %2533 = vmatpush1.bf16.msra.mxu0 %v1646
    %2534 = vmatprep.subr.bf16.mxu0 %v1651
    %2535 = vmatpush1.bf16.msra.mxu0 %v1650
    %2536 = vmatprep.subr.bf16.mxu0 %v1655
    %2537 = vmatpush1.bf16.msra.mxu0 %v1654
    %2538 = vmatprep.subr.bf16.mxu0 %v1659
    %2539 = vmatpush1.bf16.msra.mxu0 %v1658
    %2540 = vmatprep.subr.bf16.mxu0 %v1663
    %2541 = vmatpush1.bf16.msra.mxu0 %v1662
    %2542 = vmatprep.subr.bf16.mxu0 %v1667
    %2543 = vmatpush1.bf16.msra.mxu0 %v1666
    %2544 = vmatprep.subr.bf16.mxu0 0
    %2545 = vmatpush1.bf16.msra.mxu0 0
    %2546 = vmatprep.subr.bf16.mxu0 0
    %2547 = vmatpush1.bf16.msra.mxu0 0
    %2548 = vmatprep.subr.bf16.mxu0 0
    %2549 = vmatpush1.bf16.msra.mxu0 0
    %2550 = vmatprep.subr.bf16.mxu0 0
    %2551 = vmatpush1.bf16.msra.mxu0 0
    %2552 = vmatprep.subr.bf16.mxu0 0
    %2553 = vmatpush1.bf16.msra.mxu0 0
    %2554 = vmatprep.subr.bf16.mxu0 0
    %2555 = vmatpush1.bf16.msra.mxu0 0
    %2556 = vmatprep.subr.bf16.mxu0 0
    %2557 = vmatpush1.bf16.msra.mxu0 0
    %2558 = vmatprep.subr.bf16.mxu0 0
    %2559 = vmatpush1.bf16.msra.mxu0 0
    %2560 = vmatprep.mubr.bf16.mxu0 0
    %2561 = vmatmul.mubr.bf16.gmra.mrb[0].mxu0 %v2527
    %v2562 = vpop.f32.mrb[0].mxu0
    %v2563 = vadd.f32 0.0, %v2562
    %v2564 = vpop.f32.mrb[0].mxu0
    %v2565 = vadd.f32 0.0, %v2564
    %v2566 = vpop.f32.mrb[0].mxu0
    %v2567 = vpop.f32.mrb[0].mxu0
    %2568 = vdwg.mxu0
    %2569 = vmatprep.subr.bf16.mxu0 %v1641
    %2570 = vmatpush1.bf16.msra.mxu0 %v1640
    %2571 = vmatprep.subr.bf16.mxu0 %v1645
    %2572 = vmatpush1.bf16.msra.mxu0 %v1644
    %2573 = vmatprep.subr.bf16.mxu0 %v1649
    %2574 = vmatpush1.bf16.msra.mxu0 %v1648
    %2575 = vmatprep.subr.bf16.mxu0 %v1653
    %2576 = vmatpush1.bf16.msra.mxu0 %v1652
    %2577 = vmatprep.subr.bf16.mxu0 %v1657
    %2578 = vmatpush1.bf16.msra.mxu0 %v1656
    %2579 = vmatprep.subr.bf16.mxu0 %v1661
    %2580 = vmatpush1.bf16.msra.mxu0 %v1660
    %2581 = vmatprep.subr.bf16.mxu0 %v1665
    %2582 = vmatpush1.bf16.msra.mxu0 %v1664
    %2583 = vmatprep.subr.bf16.mxu0 %v1669
    %2584 = vmatpush1.bf16.msra.mxu0 %v1668
    %2585 = vmatprep.subr.bf16.mxu0 0
    %2586 = vmatpush1.bf16.msra.mxu0 0
    %2587 = vmatprep.subr.bf16.mxu0 0
    %2588 = vmatpush1.bf16.msra.mxu0 0
    %2589 = vmatprep.subr.bf16.mxu0 0
    %2590 = vmatpush1.bf16.msra.mxu0 0
    %2591 = vmatprep.subr.bf16.mxu0 0
    %2592 = vmatpush1.bf16.msra.mxu0 0
    %2593 = vmatprep.subr.bf16.mxu0 0
    %2594 = vmatpush1.bf16.msra.mxu0 0
    %2595 = vmatprep.subr.bf16.mxu0 0
    %2596 = vmatpush1.bf16.msra.mxu0 0
    %2597 = vmatprep.subr.bf16.mxu0 0
    %2598 = vmatpush1.bf16.msra.mxu0 0
    %2599 = vmatprep.subr.bf16.mxu0 0
    %2600 = vmatpush1.bf16.msra.mxu0 0
    %2601 = vmatprep.mubr.bf16.mxu0 0
    %2602 = vmatmul.mubr.bf16.gmra.mrb[0].mxu0 %v2527
    %v2603 = vpop.f32.mrb[0].mxu0
    %v2604 = vadd.f32 0.0, %v2603
    %v2605 = vpop.f32.mrb[0].mxu0
    %v2606 = vadd.f32 0.0, %v2605
    %v2607 = vpop.f32.mrb[0].mxu0
    %v2608 = vpop.f32.mrb[0].mxu0
    %2609 = vdwg.mxu0
    %v2610 = vadd.f32 %v2523, %v2563
    %v2611 = vadd.f32 %v2524, %v2565
    %v2612 = vadd.f32 %v2525, %v2604
    %v2613 = vadd.f32 %v2526, %v2606
    %v2614 = vxor.u32 %v2610, 2147483648
    %v2615 = vmul.f32 %v2614, 1.442695
    %v2616 = vpow.pop %v2615
    %v2617 = vadd.f32 %v2616, 1.0
    %v2618 = vrcp.pop %v2617
    %v2619 = vmul.f32 1.0, %v2618
    %v2620 = vxor.u32 %v2611, 2147483648
    %v2621 = vmul.f32 %v2620, 1.442695
    %v2622 = vpow.pop %v2621
    %v2623 = vadd.f32 %v2622, 1.0
    %v2624 = vrcp.pop %v2623
    %v2625 = vmul.f32 1.0, %v2624
    %v2626 = vtanh.pop %v2612
    %v2627 = vxor.u32 %v2613, 2147483648
    %v2628 = vmul.f32 %v2627, 1.442695
    %v2629 = vpow.pop %v2628
    %v2630 = vadd.f32 %v2629, 1.0
    %v2631 = vrcp.pop %v2630
    %v2632 = vmul.f32 1.0, %v2631
    %v2633 = vmul.f32 %v2625, %v2517
    %v2634 = vmul.f32 %v2619, %v2626
    %v2635 = vadd.f32 %v2633, %v2634
    %v2636 = vtanh.pop %v2635
    %v2637 = vmul.f32 %v2632, %v2636
    %v2638 = vld [vmem:[%s5] sm:$0x1]
    %v2640 = vlaneseq
    %v2641 = vshrl.u32 %v2640, 7
    %v2642 = vsub.s32 0, %v2641
    %v2643 = vrot.slane %v2638, %v2642
    %v2645 = vmul.f32 %v2637, %v2643
    %2646 = vadd.xlane.f32.xlu0 %v2645
    %v2647 = vpop.xlane.xlu0 %2646
    %v2648 = vld [vmem:[#allocation3] sm:$0x1]
    %v2650 = vlaneseq
    %v2651 = vshrl.u32 %v2650, 7
    %v2652 = vsub.s32 0, %v2651
    %v2653 = vrot.slane %v2648, %v2652
    %v2655 = vadd.f32 %v2647, %v2653
    %v2656 = vxor.u32 %v2655, 2147483648
    %v2657 = vmul.f32 %v2656, 1.442695
    %v2658 = vpow.pop %v2657
    %v2659 = vadd.f32 %v2658, 1.0
    %v2660 = vrcp.pop %v2659
    %v2661 = vmul.f32 1.0, %v2660
    %vm2662 = vcmask 1024
    %2663 = vst.msk [vmem:[%s7] sm:$0x3] %vm2662, %v2661
    // Predicated region
    $region42: #{tpu_custom_call.1} parent=1 // pred_check
      _
    $region43: #{tpu_custom_call.1} parent=1 // pred_check_branch
      %2665 = sbr.rel (0) target = $region45
    $region44: #{tpu_custom_call.1} parent=1 // pred_region
      _
    $region45: #{tpu_custom_call.1} parent=1 // pred_fallthru
      _
    // Predicated region
    $region46: #{tpu_custom_call.1} parent=1 // pred_check
      _
    $region47: #{tpu_custom_call.1} parent=1 // pred_check_branch
      %2667 = sbr.rel (0) target = $region49
    $region48: #{tpu_custom_call.1} parent=1 // pred_region
      _
    $region49: #{tpu_custom_call.1} parent=1 // pred_fallthru
      _
    %2668 = vsyncpa [#allocation5], 1
    %2669 = vsyncpa [#allocation7], 1

</llo_original>
